<compile_context>
chip_gen: v7x
topology: tpu7x:2x2x1
jax: 0.10.0
libtpu: 0.0.40
codegen_flags: <defaults>
</compile_context>

<pallas_src>
import functools

import jax
import jax.numpy as jnp
import numpy as np
from jax.experimental import pallas as pl
from jax.experimental.pallas import tpu as pltpu


# ----------------------------------------------------------------------------
# Fold reflect-pad(1) + [1,2,1]/4 blur + stride-2 along ONE axis into a dense
# (n_out, n_in) sampling matrix.  downsamp's 3x3/16 filter is separable, so
# the depthwise blur-pool is  Sr @ y @ Sc^T  per channel.
# ----------------------------------------------------------------------------
def _blur_sample_matrix(n_in):
    n_out = (n_in - 1) // 2 + 1          # (n_in + 2*1 - 3)//2 + 1
    f = np.array([1.0, 2.0, 1.0], np.float64) / 4.0
    s = np.zeros((n_out, n_in), np.float64)
    for o in range(n_out):
        for j in range(3):
            p = 2 * o + j                # index into the reflect-padded axis
            if p == 0:
                r = 1                    # ReflectionPad2d: pad[0] = x[1]
            elif p == n_in + 1:
                r = n_in - 2             # pad[n+1] = x[n-2]
            else:
                r = p - 1
            s[o, r] += f[j]
    return s.astype(np.float32)


# ----------------------------------------------------------------------------
# Fused kernel: one grid step processes `nb` images.
# ----------------------------------------------------------------------------
def _residual_downsample_kernel(alpha_ref, w1_ref, sr_ref, m2_ref, x_ref,
                                out_ref, xp_scr):
    # alpha_ref: SMEM (1,)               shared PReLU slope
    # w1_ref : VMEM (C*9, C*Wb)          conv1 tap rows, lane-masked per band
    # sr_ref : VMEM (Ho, H)              row reflect+blur+stride-2 sampler
    # m2_ref : VMEM (C*W, 2C*Wo)         column sampler folded with conv2 1x1
    # x_ref  : VMEM (nb, C, H, W)        images (native NCHW block)
    # out_ref: VMEM (nb, Ho, 2C*Wo)      lane-dense packed output
    # xp_scr : VMEM (H+2, C*Wb + 2)      zero-padded, channel-lane-packed image
    nb, C, H, W = x_ref.shape
    Wb = W + 2                            # per-channel padded band width

    alpha = alpha_ref[0]
    sr = sr_ref[...]                      # (Ho, H)
    m2 = m2_ref[...]                      # (C*W, 2C*Wo)

    # Zero the scratch once per grid step (NOT gated on program_id==0: with
    # "parallel" grid semantics each TensorCore owns its own scratch and its
    # own subset of steps).  Only the interior is rewritten per image, so the
    # pad border stays zero for every image of this step.
    xp_scr[...] = jnp.zeros_like(xp_scr)

    for b in range(nb):
        # ---- fused zero-pad(1) + channel->lane packing (#3 / #4) ------------
        for c in range(C):
            xp_scr[1:1 + H, c * Wb + 1:c * Wb + 1 + W] = x_ref[b, c]

        # ---- conv1 3x3: one shared shifted-window slice per tap (#5 / #8) ---
        # S[y, c*Wb + x] = xpad[c, y+dy, x+dx]; the weight rows are zero on the
        # per-band don't-care lanes (x >= W), which kills the columns the
        # shared slice drags in from each band's right pad.
        partial = [jnp.zeros((H, C * Wb), jnp.float32) for _ in range(C)]
        for dy in range(3):
            for dx in range(3):
                S = xp_scr[dy:dy + H, dx:dx + C * Wb]      # (H, C*Wb), 1 slice/tap
                for o in range(C):
                    wrow = w1_ref[o * 9 + dy * 3 + dx, :]   # (C*Wb,)
                    partial[o] = partial[o] + wrow * S      # wide VPU FMA

        # ---- cross-channel 4-segment lane reduce (XLU) + pack + PReLU -------
        ys = []
        for o in range(C):
            p = partial[o]
            y = p[:, 0:W]
            for c in range(1, C):
                y = y + p[:, c * Wb:c * Wb + W]
            ys.append(y)
        Y = jnp.concatenate(ys, axis=1)                     # (H, C*W) lane-packed
        Y = jnp.where(Y > 0.0, Y, alpha * Y)                # PReLU (shared slope)

        # ---- downsamp rows, then (downsamp cols x conv2 1x1): 2 matmuls (#1) -
        T = jnp.dot(sr, Y, preferred_element_type=jnp.float32)   # (Ho, C*W)
        O = jnp.dot(T, m2, preferred_element_type=jnp.float32)   # (Ho, 2C*Wo)

        # ---- single lane-dense store per image (#2) --------------------------
        out_ref[b] = O.astype(out_ref.dtype)


# ----------------------------------------------------------------------------
# Wrapper reproducing ResidualDownSample.forward (bias=False).
# ----------------------------------------------------------------------------
@functools.partial(jax.jit, static_argnames=("images_per_step",))
def residual_downsample_forward(x, w1, w2, alpha, *, images_per_step=1):
    """x: (N, C, H, W) f32; w1: (C, C, 3, 3); w2: (2C, C, 1, 1); alpha: scalar.
    Returns (N, 2C, H_out, W_out) f32 (NCHW).

    images_per_step: images per grid step.  Keep 1 (>= 2 parallel steps) on
    dual-TC v7x; use N on single-TC v5e / v6e to amortize per-step overhead.
    """
    N, C, H, W = x.shape
    OC2 = w2.shape[0]
    Ho = (H - 1) // 2 + 1
    Wo = (W - 1) // 2 + 1
    Wb = W + 2

    nb = max(1, min(int(images_per_step), N))
    while N % nb:                          # no divisibility assert; just shrink
        nb -= 1

    x = x.astype(jnp.float32)

    # conv1 tap weight slab: row (o*9 + dy*3 + dx), lane (c*Wb + xo) holds
    # w1[o, c, dy, dx] for xo < W and 0 on the per-band pad lanes.
    band_mask = jnp.concatenate([jnp.ones((W,), jnp.float32),
                                 jnp.zeros((Wb - W,), jnp.float32)])
    w1_slab = jnp.einsum('oct,x->otcx',
                         w1.astype(jnp.float32).reshape(C, C, 9),
                         band_mask).reshape(C * 9, C * Wb)          # (C*9, C*Wb)

    # Row sampler, and column sampler fused with the 1x1 conv2:
    #   M2[c*W + x, o*Wo + k] = w2[o, c] * Sc^T[x, k]
    sr = jnp.asarray(_blur_sample_matrix(H))                        # (Ho, H)
    sct = jnp.asarray(_blur_sample_matrix(W).T)                     # (W, Wo)
    m2 = jnp.einsum('oc,xk->cxok', w2.astype(jnp.float32)[:, :, 0, 0],
                    sct).reshape(C * W, OC2 * Wo)                   # (C*W, 2C*Wo)

    alpha_arr = jnp.reshape(alpha, (1,)).astype(jnp.float32)

    out_packed = pl.pallas_call(
        _residual_downsample_kernel,
        out_shape=jax.ShapeDtypeStruct((N, Ho, OC2 * Wo), jnp.float32),
        grid=(N // nb,),
        in_specs=[
            pl.BlockSpec(memory_space=pltpu.MemorySpace.SMEM),       # prelu alpha
            pl.BlockSpec((C * 9, C * Wb), lambda i: (0, 0)),         # conv1 slab
            pl.BlockSpec((Ho, H), lambda i: (0, 0)),                 # row sampler
            pl.BlockSpec((C * W, OC2 * Wo), lambda i: (0, 0)),       # col ⊗ conv2
            pl.BlockSpec((nb, C, H, W), lambda i: (i, 0, 0, 0)),     # images
        ],
        out_specs=pl.BlockSpec((nb, Ho, OC2 * Wo), lambda i: (i, 0, 0)),
        scratch_shapes=[pltpu.VMEM((H + 2, C * Wb + 2), jnp.float32)],
        compiler_params=pltpu.CompilerParams(
            dimension_semantics=("parallel",)),
    )(alpha_arr, w1_slab, sr, m2, x)

    # lane-dense (N, Ho, 2C*Wo) -> NCHW; tiny (~4 KB) XLA epilogue (#2).
    return out_packed.reshape(N, Ho, OC2, Wo).transpose(0, 2, 1, 3)


# ----------------------------------------------------------------------------
# Main: deterministic small example + pure-JAX reference check.
# ----------------------------------------------------------------------------
if __name__ == "__main__":
    # ResidualDownSample(in_channel=4), input (N, C, H, W) = (2, 4, 16, 16).
    N, C, H, W = 2, 4, 16, 16
    OC2 = 2 * C

    key = jax.random.PRNGKey(0)
    kx, k1, k2 = jax.random.split(key, 3)

    x = jax.random.normal(kx, (N, C, H, W), dtype=jnp.float32)
    b1 = 1.0 / np.sqrt(C * 9)
    w1 = jax.random.uniform(k1, (C, C, 3, 3), minval=-b1, maxval=b1,
                            dtype=jnp.float32)
    b2 = 1.0 / np.sqrt(C)
    w2 = jax.random.uniform(k2, (OC2, C, 1, 1), minval=-b2, maxval=b2,
                            dtype=jnp.float32)
    alpha = jnp.float32(0.25)      # nn.PReLU() default init

    # v7x-style launch (2 parallel grid steps -> both TensorCores).
    out = jax.block_until_ready(residual_downsample_forward(x, w1, w2, alpha))
    # v5e / v6e-style launch (all images in one grid step).
    out_batched = jax.block_until_ready(
        residual_downsample_forward(x, w1, w2, alpha, images_per_step=N))

    # ---- pure-JAX reference (mirrors the PyTorch module) --------------------
    hi = jax.lax.Precision.HIGHEST
    ref1 = jax.lax.conv_general_dilated(
        x, w1, window_strides=(1, 1), padding=[(1, 1), (1, 1)],
        dimension_numbers=("NCHW", "OIHW", "NCHW"), precision=hi)
    ref1 = jnp.where(ref1 > 0, ref1, alpha * ref1)                 # PReLU

    ref1p = jnp.pad(ref1, ((0, 0), (0, 0), (1, 1), (1, 1)), mode="reflect")
    f1 = jnp.array([1.0, 2.0, 1.0], jnp.float32)
    filt = jnp.outer(f1, f1)
    filt = filt / jnp.sum(filt)
    wblur = jnp.tile(filt[None, None], (C, 1, 1, 1))               # (C,1,3,3)
    refb = jax.lax.conv_general_dilated(
        ref1p, wblur, window_strides=(2, 2), padding=[(0, 0), (0, 0)],
        dimension_numbers=("NCHW", "OIHW", "NCHW"),
        feature_group_count=C, precision=hi)                       # downsamp
    ref2 = jax.lax.conv_general_dilated(
        refb, w2, window_strides=(1, 1), padding=[(0, 0), (0, 0)],
        dimension_numbers=("NCHW", "OIHW", "NCHW"), precision=hi)  # conv2 1x1

    np.testing.assert_allclose(np.asarray(out), np.asarray(ref2),
                               rtol=1e-4, atol=1e-4)
    np.testing.assert_allclose(np.asarray(out_batched), np.asarray(ref2),
                               rtol=1e-4, atol=1e-4)
    assert out.shape == (N, OC2, H // 2, W // 2)
    print("KERNEL_OK")
</pallas_src>

<mosaic_0001>
module attributes {stable_mosaic.version = 11 : i64} {
  func.func @_residual_downsample_kernel(%arg0: i32, %arg1: memref<1xf32, #tpu.memory_space<smem>>, %arg2: memref<36x72xf32, #tpu.memory_space<vmem>>, %arg3: memref<8x16xf32, #tpu.memory_space<vmem>>, %arg4: memref<64x64xf32, #tpu.memory_space<vmem>>, %arg5: memref<1x4x16x16xf32, #tpu.memory_space<vmem>>, %arg6: memref<1x8x64xf32, #tpu.memory_space<vmem>>, %arg7: memref<18x74xf32, #tpu.memory_space<vmem>>) attributes {dimension_semantics = [#tpu.dimension_semantics<parallel>], iteration_bounds = array<i64: 2>, scalar_prefetch = 0 : i64, scratch_operands = 1 : i64, tpu.core_type = #tpu.core_type<tc>, window_params = [{transform_indices = @transform_0, window_bounds = array<i64: 1>}, {pipeline_mode = #tpu.pipeline_mode<synchronous>, transform_indices = @transform_1, window_bounds = array<i64: 36, 72>}, {pipeline_mode = #tpu.pipeline_mode<synchronous>, transform_indices = @transform_2, window_bounds = array<i64: 8, 16>}, {pipeline_mode = #tpu.pipeline_mode<synchronous>, transform_indices = @transform_3, window_bounds = array<i64: 64, 64>}, {transform_indices = @transform_4, window_bounds = array<i64: 1, 4, 16, 16>}, {transform_indices = @transform_5, window_bounds = array<i64: 1, 8, 64>}]} {
    %c0 = arith.constant 0 : index
    %0 = memref.load %arg1[%c0] : memref<1xf32, #tpu.memory_space<smem>>
    %c0_0 = arith.constant 0 : index
    %c0_1 = arith.constant 0 : index
    %1 = vector.load %arg3[%c0_0, %c0_1] : memref<8x16xf32, #tpu.memory_space<vmem>>, vector<8x16xf32>
    %c0_2 = arith.constant 0 : index
    %c0_3 = arith.constant 0 : index
    %2 = vector.load %arg4[%c0_2, %c0_3] : memref<64x64xf32, #tpu.memory_space<vmem>>, vector<64x64xf32>
    %cst = arith.constant 0.000000e+00 : f32
    %3 = vector.broadcast %cst : f32 to vector<18x74xf32>
    %c0_4 = arith.constant 0 : index
    %c0_5 = arith.constant 0 : index
    %4 = vector.load %arg7[%c0_4, %c0_5] : memref<18x74xf32, #tpu.memory_space<vmem>>, vector<18x74xf32>
    tpu.vector_store %arg7[%c0_4, %c0_5], %3 {strides = array<i32>} : memref<18x74xf32, #tpu.memory_space<vmem>>, vector<18x74xf32>,
    %c0_6 = arith.constant 0 : index
    %c0_7 = arith.constant 0 : index
    %c0_8 = arith.constant 0 : index
    %c0_9 = arith.constant 0 : index
    %5 = vector.load %arg5[%c0_6, %c0_7, %c0_8, %c0_9] : memref<1x4x16x16xf32, #tpu.memory_space<vmem>>, vector<1x1x16x16xf32>
    %6 = vector.shape_cast %5 : vector<1x1x16x16xf32> to vector<16x16xf32>
    %c1 = arith.constant 1 : index
    %c1_10 = arith.constant 1 : index
    %7 = vector.load %arg7[%c1, %c1_10] : memref<18x74xf32, #tpu.memory_space<vmem>>, vector<16x16xf32>
    tpu.vector_store %arg7[%c1, %c1_10], %6 {strides = array<i32>} : memref<18x74xf32, #tpu.memory_space<vmem>>, vector<16x16xf32>,
    %c0_11 = arith.constant 0 : index
    %c1_12 = arith.constant 1 : index
    %c0_13 = arith.constant 0 : index
    %c0_14 = arith.constant 0 : index
    %8 = vector.load %arg5[%c0_11, %c1_12, %c0_13, %c0_14] : memref<1x4x16x16xf32, #tpu.memory_space<vmem>>, vector<1x1x16x16xf32>
    %9 = vector.shape_cast %8 : vector<1x1x16x16xf32> to vector<16x16xf32>
    %c1_15 = arith.constant 1 : index
    %c19 = arith.constant 19 : index
    %10 = vector.load %arg7[%c1_15, %c19] : memref<18x74xf32, #tpu.memory_space<vmem>>, vector<16x16xf32>
    tpu.vector_store %arg7[%c1_15, %c19], %9 {strides = array<i32>} : memref<18x74xf32, #tpu.memory_space<vmem>>, vector<16x16xf32>,
    %c0_16 = arith.constant 0 : index
    %c2 = arith.constant 2 : index
    %c0_17 = arith.constant 0 : index
    %c0_18 = arith.constant 0 : index
    %11 = vector.load %arg5[%c0_16, %c2, %c0_17, %c0_18] : memref<1x4x16x16xf32, #tpu.memory_space<vmem>>, vector<1x1x16x16xf32>
    %12 = vector.shape_cast %11 : vector<1x1x16x16xf32> to vector<16x16xf32>
    %c1_19 = arith.constant 1 : index
    %c37 = arith.constant 37 : index
    %13 = vector.load %arg7[%c1_19, %c37] : memref<18x74xf32, #tpu.memory_space<vmem>>, vector<16x16xf32>
    tpu.vector_store %arg7[%c1_19, %c37], %12 {strides = array<i32>} : memref<18x74xf32, #tpu.memory_space<vmem>>, vector<16x16xf32>,
    %c0_20 = arith.constant 0 : index
    %c3 = arith.constant 3 : index
    %c0_21 = arith.constant 0 : index
    %c0_22 = arith.constant 0 : index
    %14 = vector.load %arg5[%c0_20, %c3, %c0_21, %c0_22] : memref<1x4x16x16xf32, #tpu.memory_space<vmem>>, vector<1x1x16x16xf32>
    %15 = vector.shape_cast %14 : vector<1x1x16x16xf32> to vector<16x16xf32>
    %c1_23 = arith.constant 1 : index
    %c55 = arith.constant 55 : index
    %16 = vector.load %arg7[%c1_23, %c55] : memref<18x74xf32, #tpu.memory_space<vmem>>, vector<16x16xf32>
    tpu.vector_store %arg7[%c1_23, %c55], %15 {strides = array<i32>} : memref<18x74xf32, #tpu.memory_space<vmem>>, vector<16x16xf32>,
    %cst_24 = arith.constant 0.000000e+00 : f32
    %17 = vector.broadcast %cst_24 : f32 to vector<16x72xf32>
    %cst_25 = arith.constant 0.000000e+00 : f32
    %18 = vector.broadcast %cst_25 : f32 to vector<16x72xf32>
    %cst_26 = arith.constant 0.000000e+00 : f32
    %19 = vector.broadcast %cst_26 : f32 to vector<16x72xf32>
    %cst_27 = arith.constant 0.000000e+00 : f32
    %20 = vector.broadcast %cst_27 : f32 to vector<16x72xf32>
    %c0_28 = arith.constant 0 : index
    %c0_29 = arith.constant 0 : index
    %21 = vector.load %arg7[%c0_28, %c0_29] : memref<18x74xf32, #tpu.memory_space<vmem>>, vector<16x72xf32>
    %c0_30 = arith.constant 0 : index
    %c0_31 = arith.constant 0 : index
    %22 = vector.load %arg2[%c0_30, %c0_31] : memref<36x72xf32, #tpu.memory_space<vmem>>, vector<1x72xf32>
    %23 = vector.shape_cast %22 : vector<1x72xf32> to vector<72xf32>
    %24 = vector.shape_cast %23 : vector<72xf32> to vector<1x72xf32>
    %25 = vector.broadcast %24 : vector<1x72xf32> to vector<16x72xf32>
    %26 = arith.mulf %25, %21 : vector<16x72xf32>
    %27 = arith.addf %17, %26 : vector<16x72xf32>
    %c9 = arith.constant 9 : index
    %c0_32 = arith.constant 0 : index
    %28 = vector.load %arg2[%c9, %c0_32] : memref<36x72xf32, #tpu.memory_space<vmem>>, vector<1x72xf32>
    %29 = vector.shape_cast %28 : vector<1x72xf32> to vector<72xf32>
    %30 = vector.shape_cast %29 : vector<72xf32> to vector<1x72xf32>
    %31 = vector.broadcast %30 : vector<1x72xf32> to vector<16x72xf32>
    %32 = arith.mulf %31, %21 : vector<16x72xf32>
    %33 = arith.addf %18, %32 : vector<16x72xf32>
    %c18 = arith.constant 18 : index
    %c0_33 = arith.constant 0 : index
    %34 = vector.load %arg2[%c18, %c0_33] : memref<36x72xf32, #tpu.memory_space<vmem>>, vector<1x72xf32>
    %35 = vector.shape_cast %34 : vector<1x72xf32> to vector<72xf32>
    %36 = vector.shape_cast %35 : vector<72xf32> to vector<1x72xf32>
    %37 = vector.broadcast %36 : vector<1x72xf32> to vector<16x72xf32>
    %38 = arith.mulf %37, %21 : vector<16x72xf32>
    %39 = arith.addf %19, %38 : vector<16x72xf32>
    %c27 = arith.constant 27 : index
    %c0_34 = arith.constant 0 : index
    %40 = vector.load %arg2[%c27, %c0_34] : memref<36x72xf32, #tpu.memory_space<vmem>>, vector<1x72xf32>
    %41 = vector.shape_cast %40 : vector<1x72xf32> to vector<72xf32>
    %42 = vector.shape_cast %41 : vector<72xf32> to vector<1x72xf32>
    %43 = vector.broadcast %42 : vector<1x72xf32> to vector<16x72xf32>
    %44 = arith.mulf %43, %21 : vector<16x72xf32>
    %45 = arith.addf %20, %44 : vector<16x72xf32>
    %c0_35 = arith.constant 0 : index
    %c1_36 = arith.constant 1 : index
    %46 = vector.load %arg7[%c0_35, %c1_36] : memref<18x74xf32, #tpu.memory_space<vmem>>, vector<16x72xf32>
    %c1_37 = arith.constant 1 : index
    %c0_38 = arith.constant 0 : index
    %47 = vector.load %arg2[%c1_37, %c0_38] : memref<36x72xf32, #tpu.memory_space<vmem>>, vector<1x72xf32>
    %48 = vector.shape_cast %47 : vector<1x72xf32> to vector<72xf32>
    %49 = vector.shape_cast %48 : vector<72xf32> to vector<1x72xf32>
    %50 = vector.broadcast %49 : vector<1x72xf32> to vector<16x72xf32>
    %51 = arith.mulf %50, %46 : vector<16x72xf32>
    %52 = arith.addf %27, %51 : vector<16x72xf32>
    %c10 = arith.constant 10 : index
    %c0_39 = arith.constant 0 : index
    %53 = vector.load %arg2[%c10, %c0_39] : memref<36x72xf32, #tpu.memory_space<vmem>>, vector<1x72xf32>
    %54 = vector.shape_cast %53 : vector<1x72xf32> to vector<72xf32>
    %55 = vector.shape_cast %54 : vector<72xf32> to vector<1x72xf32>
    %56 = vector.broadcast %55 : vector<1x72xf32> to vector<16x72xf32>
    %57 = arith.mulf %56, %46 : vector<16x72xf32>
    %58 = arith.addf %33, %57 : vector<16x72xf32>
    %c19_40 = arith.constant 19 : index
    %c0_41 = arith.constant 0 : index
    %59 = vector.load %arg2[%c19_40, %c0_41] : memref<36x72xf32, #tpu.memory_space<vmem>>, vector<1x72xf32>
    %60 = vector.shape_cast %59 : vector<1x72xf32> to vector<72xf32>
    %61 = vector.shape_cast %60 : vector<72xf32> to vector<1x72xf32>
    %62 = vector.broadcast %61 : vector<1x72xf32> to vector<16x72xf32>
    %63 = arith.mulf %62, %46 : vector<16x72xf32>
    %64 = arith.addf %39, %63 : vector<16x72xf32>
    %c28 = arith.constant 28 : index
    %c0_42 = arith.constant 0 : index
    %65 = vector.load %arg2[%c28, %c0_42] : memref<36x72xf32, #tpu.memory_space<vmem>>, vector<1x72xf32>
    %66 = vector.shape_cast %65 : vector<1x72xf32> to vector<72xf32>
    %67 = vector.shape_cast %66 : vector<72xf32> to vector<1x72xf32>
    %68 = vector.broadcast %67 : vector<1x72xf32> to vector<16x72xf32>
    %69 = arith.mulf %68, %46 : vector<16x72xf32>
    %70 = arith.addf %45, %69 : vector<16x72xf32>
    %c0_43 = arith.constant 0 : index
    %c2_44 = arith.constant 2 : index
    %71 = vector.load %arg7[%c0_43, %c2_44] : memref<18x74xf32, #tpu.memory_space<vmem>>, vector<16x72xf32>
    %c2_45 = arith.constant 2 : index
    %c0_46 = arith.constant 0 : index
    %72 = vector.load %arg2[%c2_45, %c0_46] : memref<36x72xf32, #tpu.memory_space<vmem>>, vector<1x72xf32>
    %73 = vector.shape_cast %72 : vector<1x72xf32> to vector<72xf32>
    %74 = vector.shape_cast %73 : vector<72xf32> to vector<1x72xf32>
    %75 = vector.broadcast %74 : vector<1x72xf32> to vector<16x72xf32>
    %76 = arith.mulf %75, %71 : vector<16x72xf32>
    %77 = arith.addf %52, %76 : vector<16x72xf32>
    %c11 = arith.constant 11 : index
    %c0_47 = arith.constant 0 : index
    %78 = vector.load %arg2[%c11, %c0_47] : memref<36x72xf32, #tpu.memory_space<vmem>>, vector<1x72xf32>
    %79 = vector.shape_cast %78 : vector<1x72xf32> to vector<72xf32>
    %80 = vector.shape_cast %79 : vector<72xf32> to vector<1x72xf32>
    %81 = vector.broadcast %80 : vector<1x72xf32> to vector<16x72xf32>
    %82 = arith.mulf %81, %71 : vector<16x72xf32>
    %83 = arith.addf %58, %82 : vector<16x72xf32>
    %c20 = arith.constant 20 : index
    %c0_48 = arith.constant 0 : index
    %84 = vector.load %arg2[%c20, %c0_48] : memref<36x72xf32, #tpu.memory_space<vmem>>, vector<1x72xf32>
    %85 = vector.shape_cast %84 : vector<1x72xf32> to vector<72xf32>
    %86 = vector.shape_cast %85 : vector<72xf32> to vector<1x72xf32>
    %87 = vector.broadcast %86 : vector<1x72xf32> to vector<16x72xf32>
    %88 = arith.mulf %87, %71 : vector<16x72xf32>
    %89 = arith.addf %64, %88 : vector<16x72xf32>
    %c29 = arith.constant 29 : index
    %c0_49 = arith.constant 0 : index
    %90 = vector.load %arg2[%c29, %c0_49] : memref<36x72xf32, #tpu.memory_space<vmem>>, vector<1x72xf32>
    %91 = vector.shape_cast %90 : vector<1x72xf32> to vector<72xf32>
    %92 = vector.shape_cast %91 : vector<72xf32> to vector<1x72xf32>
    %93 = vector.broadcast %92 : vector<1x72xf32> to vector<16x72xf32>
    %94 = arith.mulf %93, %71 : vector<16x72xf32>
    %95 = arith.addf %70, %94 : vector<16x72xf32>
    %c1_50 = arith.constant 1 : index
    %c0_51 = arith.constant 0 : index
    %96 = vector.load %arg7[%c1_50, %c0_51] : memref<18x74xf32, #tpu.memory_space<vmem>>, vector<16x72xf32>
    %c3_52 = arith.constant 3 : index
    %c0_53 = arith.constant 0 : index
    %97 = vector.load %arg2[%c3_52, %c0_53] : memref<36x72xf32, #tpu.memory_space<vmem>>, vector<1x72xf32>
    %98 = vector.shape_cast %97 : vector<1x72xf32> to vector<72xf32>
    %99 = vector.shape_cast %98 : vector<72xf32> to vector<1x72xf32>
    %100 = vector.broadcast %99 : vector<1x72xf32> to vector<16x72xf32>
    %101 = arith.mulf %100, %96 : vector<16x72xf32>
    %102 = arith.addf %77, %101 : vector<16x72xf32>
    %c12 = arith.constant 12 : index
    %c0_54 = arith.constant 0 : index
    %103 = vector.load %arg2[%c12, %c0_54] : memref<36x72xf32, #tpu.memory_space<vmem>>, vector<1x72xf32>
    %104 = vector.shape_cast %103 : vector<1x72xf32> to vector<72xf32>
    %105 = vector.shape_cast %104 : vector<72xf32> to vector<1x72xf32>
    %106 = vector.broadcast %105 : vector<1x72xf32> to vector<16x72xf32>
    %107 = arith.mulf %106, %96 : vector<16x72xf32>
    %108 = arith.addf %83, %107 : vector<16x72xf32>
    %c21 = arith.constant 21 : index
    %c0_55 = arith.constant 0 : index
    %109 = vector.load %arg2[%c21, %c0_55] : memref<36x72xf32, #tpu.memory_space<vmem>>, vector<1x72xf32>
    %110 = vector.shape_cast %109 : vector<1x72xf32> to vector<72xf32>
    %111 = vector.shape_cast %110 : vector<72xf32> to vector<1x72xf32>
    %112 = vector.broadcast %111 : vector<1x72xf32> to vector<16x72xf32>
    %113 = arith.mulf %112, %96 : vector<16x72xf32>
    %114 = arith.addf %89, %113 : vector<16x72xf32>
    %c30 = arith.constant 30 : index
    %c0_56 = arith.constant 0 : index
    %115 = vector.load %arg2[%c30, %c0_56] : memref<36x72xf32, #tpu.memory_space<vmem>>, vector<1x72xf32>
    %116 = vector.shape_cast %115 : vector<1x72xf32> to vector<72xf32>
    %117 = vector.shape_cast %116 : vector<72xf32> to vector<1x72xf32>
    %118 = vector.broadcast %117 : vector<1x72xf32> to vector<16x72xf32>
    %119 = arith.mulf %118, %96 : vector<16x72xf32>
    %120 = arith.addf %95, %119 : vector<16x72xf32>
    %c1_57 = arith.constant 1 : index
    %c1_58 = arith.constant 1 : index
    %121 = vector.load %arg7[%c1_57, %c1_58] : memref<18x74xf32, #tpu.memory_space<vmem>>, vector<16x72xf32>
    %c4 = arith.constant 4 : index
    %c0_59 = arith.constant 0 : index
    %122 = vector.load %arg2[%c4, %c0_59] : memref<36x72xf32, #tpu.memory_space<vmem>>, vector<1x72xf32>
    %123 = vector.shape_cast %122 : vector<1x72xf32> to vector<72xf32>
    %124 = vector.shape_cast %123 : vector<72xf32> to vector<1x72xf32>
    %125 = vector.broadcast %124 : vector<1x72xf32> to vector<16x72xf32>
    %126 = arith.mulf %125, %121 : vector<16x72xf32>
    %127 = arith.addf %102, %126 : vector<16x72xf32>
    %c13 = arith.constant 13 : index
    %c0_60 = arith.constant 0 : index
    %128 = vector.load %arg2[%c13, %c0_60] : memref<36x72xf32, #tpu.memory_space<vmem>>, vector<1x72xf32>
    %129 = vector.shape_cast %128 : vector<1x72xf32> to vector<72xf32>
    %130 = vector.shape_cast %129 : vector<72xf32> to vector<1x72xf32>
    %131 = vector.broadcast %130 : vector<1x72xf32> to vector<16x72xf32>
    %132 = arith.mulf %131, %121 : vector<16x72xf32>
    %133 = arith.addf %108, %132 : vector<16x72xf32>
    %c22 = arith.constant 22 : index
    %c0_61 = arith.constant 0 : index
    %134 = vector.load %arg2[%c22, %c0_61] : memref<36x72xf32, #tpu.memory_space<vmem>>, vector<1x72xf32>
    %135 = vector.shape_cast %134 : vector<1x72xf32> to vector<72xf32>
    %136 = vector.shape_cast %135 : vector<72xf32> to vector<1x72xf32>
    %137 = vector.broadcast %136 : vector<1x72xf32> to vector<16x72xf32>
    %138 = arith.mulf %137, %121 : vector<16x72xf32>
    %139 = arith.addf %114, %138 : vector<16x72xf32>
    %c31 = arith.constant 31 : index
    %c0_62 = arith.constant 0 : index
    %140 = vector.load %arg2[%c31, %c0_62] : memref<36x72xf32, #tpu.memory_space<vmem>>, vector<1x72xf32>
    %141 = vector.shape_cast %140 : vector<1x72xf32> to vector<72xf32>
    %142 = vector.shape_cast %141 : vector<72xf32> to vector<1x72xf32>
    %143 = vector.broadcast %142 : vector<1x72xf32> to vector<16x72xf32>
    %144 = arith.mulf %143, %121 : vector<16x72xf32>
    %145 = arith.addf %120, %144 : vector<16x72xf32>
    %c1_63 = arith.constant 1 : index
    %c2_64 = arith.constant 2 : index
    %146 = vector.load %arg7[%c1_63, %c2_64] : memref<18x74xf32, #tpu.memory_space<vmem>>, vector<16x72xf32>
    %c5 = arith.constant 5 : index
    %c0_65 = arith.constant 0 : index
    %147 = vector.load %arg2[%c5, %c0_65] : memref<36x72xf32, #tpu.memory_space<vmem>>, vector<1x72xf32>
    %148 = vector.shape_cast %147 : vector<1x72xf32> to vector<72xf32>
    %149 = vector.shape_cast %148 : vector<72xf32> to vector<1x72xf32>
    %150 = vector.broadcast %149 : vector<1x72xf32> to vector<16x72xf32>
    %151 = arith.mulf %150, %146 : vector<16x72xf32>
    %152 = arith.addf %127, %151 : vector<16x72xf32>
    %c14 = arith.constant 14 : index
    %c0_66 = arith.constant 0 : index
    %153 = vector.load %arg2[%c14, %c0_66] : memref<36x72xf32, #tpu.memory_space<vmem>>, vector<1x72xf32>
    %154 = vector.shape_cast %153 : vector<1x72xf32> to vector<72xf32>
    %155 = vector.shape_cast %154 : vector<72xf32> to vector<1x72xf32>
    %156 = vector.broadcast %155 : vector<1x72xf32> to vector<16x72xf32>
    %157 = arith.mulf %156, %146 : vector<16x72xf32>
    %158 = arith.addf %133, %157 : vector<16x72xf32>
    %c23 = arith.constant 23 : index
    %c0_67 = arith.constant 0 : index
    %159 = vector.load %arg2[%c23, %c0_67] : memref<36x72xf32, #tpu.memory_space<vmem>>, vector<1x72xf32>
    %160 = vector.shape_cast %159 : vector<1x72xf32> to vector<72xf32>
    %161 = vector.shape_cast %160 : vector<72xf32> to vector<1x72xf32>
    %162 = vector.broadcast %161 : vector<1x72xf32> to vector<16x72xf32>
    %163 = arith.mulf %162, %146 : vector<16x72xf32>
    %164 = arith.addf %139, %163 : vector<16x72xf32>
    %c32 = arith.constant 32 : index
    %c0_68 = arith.constant 0 : index
    %165 = vector.load %arg2[%c32, %c0_68] : memref<36x72xf32, #tpu.memory_space<vmem>>, vector<1x72xf32>
    %166 = vector.shape_cast %165 : vector<1x72xf32> to vector<72xf32>
    %167 = vector.shape_cast %166 : vector<72xf32> to vector<1x72xf32>
    %168 = vector.broadcast %167 : vector<1x72xf32> to vector<16x72xf32>
    %169 = arith.mulf %168, %146 : vector<16x72xf32>
    %170 = arith.addf %145, %169 : vector<16x72xf32>
    %c2_69 = arith.constant 2 : index
    %c0_70 = arith.constant 0 : index
    %171 = vector.load %arg7[%c2_69, %c0_70] : memref<18x74xf32, #tpu.memory_space<vmem>>, vector<16x72xf32>
    %c6 = arith.constant 6 : index
    %c0_71 = arith.constant 0 : index
    %172 = vector.load %arg2[%c6, %c0_71] : memref<36x72xf32, #tpu.memory_space<vmem>>, vector<1x72xf32>
    %173 = vector.shape_cast %172 : vector<1x72xf32> to vector<72xf32>
    %174 = vector.shape_cast %173 : vector<72xf32> to vector<1x72xf32>
    %175 = vector.broadcast %174 : vector<1x72xf32> to vector<16x72xf32>
    %176 = arith.mulf %175, %171 : vector<16x72xf32>
    %177 = arith.addf %152, %176 : vector<16x72xf32>
    %c15 = arith.constant 15 : index
    %c0_72 = arith.constant 0 : index
    %178 = vector.load %arg2[%c15, %c0_72] : memref<36x72xf32, #tpu.memory_space<vmem>>, vector<1x72xf32>
    %179 = vector.shape_cast %178 : vector<1x72xf32> to vector<72xf32>
    %180 = vector.shape_cast %179 : vector<72xf32> to vector<1x72xf32>
    %181 = vector.broadcast %180 : vector<1x72xf32> to vector<16x72xf32>
    %182 = arith.mulf %181, %171 : vector<16x72xf32>
    %183 = arith.addf %158, %182 : vector<16x72xf32>
    %c24 = arith.constant 24 : index
    %c0_73 = arith.constant 0 : index
    %184 = vector.load %arg2[%c24, %c0_73] : memref<36x72xf32, #tpu.memory_space<vmem>>, vector<1x72xf32>
    %185 = vector.shape_cast %184 : vector<1x72xf32> to vector<72xf32>
    %186 = vector.shape_cast %185 : vector<72xf32> to vector<1x72xf32>
    %187 = vector.broadcast %186 : vector<1x72xf32> to vector<16x72xf32>
    %188 = arith.mulf %187, %171 : vector<16x72xf32>
    %189 = arith.addf %164, %188 : vector<16x72xf32>
    %c33 = arith.constant 33 : index
    %c0_74 = arith.constant 0 : index
    %190 = vector.load %arg2[%c33, %c0_74] : memref<36x72xf32, #tpu.memory_space<vmem>>, vector<1x72xf32>
    %191 = vector.shape_cast %190 : vector<1x72xf32> to vector<72xf32>
    %192 = vector.shape_cast %191 : vector<72xf32> to vector<1x72xf32>
    %193 = vector.broadcast %192 : vector<1x72xf32> to vector<16x72xf32>
    %194 = arith.mulf %193, %171 : vector<16x72xf32>
    %195 = arith.addf %170, %194 : vector<16x72xf32>
    %c2_75 = arith.constant 2 : index
    %c1_76 = arith.constant 1 : index
    %196 = vector.load %arg7[%c2_75, %c1_76] : memref<18x74xf32, #tpu.memory_space<vmem>>, vector<16x72xf32>
    %c7 = arith.constant 7 : index
    %c0_77 = arith.constant 0 : index
    %197 = vector.load %arg2[%c7, %c0_77] : memref<36x72xf32, #tpu.memory_space<vmem>>, vector<1x72xf32>
    %198 = vector.shape_cast %197 : vector<1x72xf32> to vector<72xf32>
    %199 = vector.shape_cast %198 : vector<72xf32> to vector<1x72xf32>
    %200 = vector.broadcast %199 : vector<1x72xf32> to vector<16x72xf32>
    %201 = arith.mulf %200, %196 : vector<16x72xf32>
    %202 = arith.addf %177, %201 : vector<16x72xf32>
    %c16 = arith.constant 16 : index
    %c0_78 = arith.constant 0 : index
    %203 = vector.load %arg2[%c16, %c0_78] : memref<36x72xf32, #tpu.memory_space<vmem>>, vector<1x72xf32>
    %204 = vector.shape_cast %203 : vector<1x72xf32> to vector<72xf32>
    %205 = vector.shape_cast %204 : vector<72xf32> to vector<1x72xf32>
    %206 = vector.broadcast %205 : vector<1x72xf32> to vector<16x72xf32>
    %207 = arith.mulf %206, %196 : vector<16x72xf32>
    %208 = arith.addf %183, %207 : vector<16x72xf32>
    %c25 = arith.constant 25 : index
    %c0_79 = arith.constant 0 : index
    %209 = vector.load %arg2[%c25, %c0_79] : memref<36x72xf32, #tpu.memory_space<vmem>>, vector<1x72xf32>
    %210 = vector.shape_cast %209 : vector<1x72xf32> to vector<72xf32>
    %211 = vector.shape_cast %210 : vector<72xf32> to vector<1x72xf32>
    %212 = vector.broadcast %211 : vector<1x72xf32> to vector<16x72xf32>
    %213 = arith.mulf %212, %196 : vector<16x72xf32>
    %214 = arith.addf %189, %213 : vector<16x72xf32>
    %c34 = arith.constant 34 : index
    %c0_80 = arith.constant 0 : index
    %215 = vector.load %arg2[%c34, %c0_80] : memref<36x72xf32, #tpu.memory_space<vmem>>, vector<1x72xf32>
    %216 = vector.shape_cast %215 : vector<1x72xf32> to vector<72xf32>
    %217 = vector.shape_cast %216 : vector<72xf32> to vector<1x72xf32>
    %218 = vector.broadcast %217 : vector<1x72xf32> to vector<16x72xf32>
    %219 = arith.mulf %218, %196 : vector<16x72xf32>
    %220 = arith.addf %195, %219 : vector<16x72xf32>
    %c2_81 = arith.constant 2 : index
    %c2_82 = arith.constant 2 : index
    %221 = vector.load %arg7[%c2_81, %c2_82] : memref<18x74xf32, #tpu.memory_space<vmem>>, vector<16x72xf32>
    %c8 = arith.constant 8 : index
    %c0_83 = arith.constant 0 : index
    %222 = vector.load %arg2[%c8, %c0_83] : memref<36x72xf32, #tpu.memory_space<vmem>>, vector<1x72xf32>
    %223 = vector.shape_cast %222 : vector<1x72xf32> to vector<72xf32>
    %224 = vector.shape_cast %223 : vector<72xf32> to vector<1x72xf32>
    %225 = vector.broadcast %224 : vector<1x72xf32> to vector<16x72xf32>
    %226 = arith.mulf %225, %221 : vector<16x72xf32>
    %227 = arith.addf %202, %226 : vector<16x72xf32>
    %c17 = arith.constant 17 : index
    %c0_84 = arith.constant 0 : index
    %228 = vector.load %arg2[%c17, %c0_84] : memref<36x72xf32, #tpu.memory_space<vmem>>, vector<1x72xf32>
    %229 = vector.shape_cast %228 : vector<1x72xf32> to vector<72xf32>
    %230 = vector.shape_cast %229 : vector<72xf32> to vector<1x72xf32>
    %231 = vector.broadcast %230 : vector<1x72xf32> to vector<16x72xf32>
    %232 = arith.mulf %231, %221 : vector<16x72xf32>
    %233 = arith.addf %208, %232 : vector<16x72xf32>
    %c26 = arith.constant 26 : index
    %c0_85 = arith.constant 0 : index
    %234 = vector.load %arg2[%c26, %c0_85] : memref<36x72xf32, #tpu.memory_space<vmem>>, vector<1x72xf32>
    %235 = vector.shape_cast %234 : vector<1x72xf32> to vector<72xf32>
    %236 = vector.shape_cast %235 : vector<72xf32> to vector<1x72xf32>
    %237 = vector.broadcast %236 : vector<1x72xf32> to vector<16x72xf32>
    %238 = arith.mulf %237, %221 : vector<16x72xf32>
    %239 = arith.addf %214, %238 : vector<16x72xf32>
    %c35 = arith.constant 35 : index
    %c0_86 = arith.constant 0 : index
    %240 = vector.load %arg2[%c35, %c0_86] : memref<36x72xf32, #tpu.memory_space<vmem>>, vector<1x72xf32>
    %241 = vector.shape_cast %240 : vector<1x72xf32> to vector<72xf32>
    %242 = vector.shape_cast %241 : vector<72xf32> to vector<1x72xf32>
    %243 = vector.broadcast %242 : vector<1x72xf32> to vector<16x72xf32>
    %244 = arith.mulf %243, %221 : vector<16x72xf32>
    %245 = arith.addf %220, %244 : vector<16x72xf32>
    %246 = vector.extract_strided_slice %227 {offsets = [0, 0], sizes = [16, 16], strides = [1, 1]} : vector<16x72xf32> to vector<16x16xf32>
    %247 = vector.extract_strided_slice %227 {offsets = [0, 18], sizes = [16, 16], strides = [1, 1]} : vector<16x72xf32> to vector<16x16xf32>
    %248 = arith.addf %246, %247 : vector<16x16xf32>
    %249 = vector.extract_strided_slice %227 {offsets = [0, 36], sizes = [16, 16], strides = [1, 1]} : vector<16x72xf32> to vector<16x16xf32>
    %250 = arith.addf %248, %249 : vector<16x16xf32>
    %251 = vector.extract_strided_slice %227 {offsets = [0, 54], sizes = [16, 16], strides = [1, 1]} : vector<16x72xf32> to vector<16x16xf32>
    %252 = arith.addf %250, %251 : vector<16x16xf32>
    %253 = vector.extract_strided_slice %233 {offsets = [0, 0], sizes = [16, 16], strides = [1, 1]} : vector<16x72xf32> to vector<16x16xf32>
    %254 = vector.extract_strided_slice %233 {offsets = [0, 18], sizes = [16, 16], strides = [1, 1]} : vector<16x72xf32> to vector<16x16xf32>
    %255 = arith.addf %253, %254 : vector<16x16xf32>
    %256 = vector.extract_strided_slice %233 {offsets = [0, 36], sizes = [16, 16], strides = [1, 1]} : vector<16x72xf32> to vector<16x16xf32>
    %257 = arith.addf %255, %256 : vector<16x16xf32>
    %258 = vector.extract_strided_slice %233 {offsets = [0, 54], sizes = [16, 16], strides = [1, 1]} : vector<16x72xf32> to vector<16x16xf32>
    %259 = arith.addf %257, %258 : vector<16x16xf32>
    %260 = vector.extract_strided_slice %239 {offsets = [0, 0], sizes = [16, 16], strides = [1, 1]} : vector<16x72xf32> to vector<16x16xf32>
    %261 = vector.extract_strided_slice %239 {offsets = [0, 18], sizes = [16, 16], strides = [1, 1]} : vector<16x72xf32> to vector<16x16xf32>
    %262 = arith.addf %260, %261 : vector<16x16xf32>
    %263 = vector.extract_strided_slice %239 {offsets = [0, 36], sizes = [16, 16], strides = [1, 1]} : vector<16x72xf32> to vector<16x16xf32>
    %264 = arith.addf %262, %263 : vector<16x16xf32>
    %265 = vector.extract_strided_slice %239 {offsets = [0, 54], sizes = [16, 16], strides = [1, 1]} : vector<16x72xf32> to vector<16x16xf32>
    %266 = arith.addf %264, %265 : vector<16x16xf32>
    %267 = vector.extract_strided_slice %245 {offsets = [0, 0], sizes = [16, 16], strides = [1, 1]} : vector<16x72xf32> to vector<16x16xf32>
    %268 = vector.extract_strided_slice %245 {offsets = [0, 18], sizes = [16, 16], strides = [1, 1]} : vector<16x72xf32> to vector<16x16xf32>
    %269 = arith.addf %267, %268 : vector<16x16xf32>
    %270 = vector.extract_strided_slice %245 {offsets = [0, 36], sizes = [16, 16], strides = [1, 1]} : vector<16x72xf32> to vector<16x16xf32>
    %271 = arith.addf %269, %270 : vector<16x16xf32>
    %272 = vector.extract_strided_slice %245 {offsets = [0, 54], sizes = [16, 16], strides = [1, 1]} : vector<16x72xf32> to vector<16x16xf32>
    %273 = arith.addf %271, %272 : vector<16x16xf32>
    %274 = tpu.concatenate %252, %259, %266, %273 in 1 : vector<16x16xf32>, vector<16x16xf32>, vector<16x16xf32>, vector<16x16xf32> -> vector<16x64xf32>
    %cst_87 = arith.constant 0.000000e+00 : f32
    %275 = vector.broadcast %cst_87 : f32 to vector<16x64xf32>
    %276 = arith.cmpf ogt, %274, %275 : vector<16x64xf32>
    %277 = vector.broadcast %0 : f32 to vector<16x64xf32>
    %278 = arith.mulf %277, %274 : vector<16x64xf32>
    %279 = arith.select %276, %274, %278 : vector<16x64xi1>, vector<16x64xf32>
    %cst_88 = arith.constant dense<0.000000e+00> : vector<8x64xf32>
    %280 = tpu.matmul %1, %279, %cst_88 {dimension_numbers = #tpu.dot_dimension_numbers<[1], [0], [0], [1], [0, 0, 1, 1], [], []>} : vector<8x16xf32>, vector<16x64xf32>, vector<8x64xf32> -> vector<8x64xf32>
    %cst_89 = arith.constant dense<0.000000e+00> : vector<8x64xf32>
    %281 = tpu.matmul %280, %2, %cst_89 {dimension_numbers = #tpu.dot_dimension_numbers<[1], [0], [0], [1], [0, 0, 1, 1], [], []>} : vector<8x64xf32>, vector<64x64xf32>, vector<8x64xf32> -> vector<8x64xf32>
    %c0_90 = arith.constant 0 : index
    %c0_91 = arith.constant 0 : index
    %c0_92 = arith.constant 0 : index
    %282 = vector.load %arg6[%c0_90, %c0_91, %c0_92] : memref<1x8x64xf32, #tpu.memory_space<vmem>>, vector<1x8x64xf32>
    %283 = vector.shape_cast %282 : vector<1x8x64xf32> to vector<8x64xf32>
    %284 = vector.shape_cast %281 : vector<8x64xf32> to vector<1x8x64xf32>
    tpu.vector_store %arg6[%c0_90, %c0_91, %c0_92], %284 {strides = array<i32>} : memref<1x8x64xf32, #tpu.memory_space<vmem>>, vector<1x8x64xf32>,
    return
  }
  func.func @transform_0(%arg0: i32) -> i32 {
    %c0_i32 = arith.constant 0 : i32
    %c0_i32_0 = arith.constant 0 : i32
    return %c0_i32 : i32
  }
  func.func @transform_1(%arg0: i32) -> (i32, i32) {
    %c0_i32 = arith.constant 0 : i32
    %c0_i32_0 = arith.constant 0 : i32
    %c0_i32_1 = arith.constant 0 : i32
    return %c0_i32, %c0_i32_0 : i32, i32
  }
  func.func @transform_2(%arg0: i32) -> (i32, i32) {
    %c0_i32 = arith.constant 0 : i32
    %c0_i32_0 = arith.constant 0 : i32
    %c0_i32_1 = arith.constant 0 : i32
    return %c0_i32, %c0_i32_0 : i32, i32
  }
  func.func @transform_3(%arg0: i32) -> (i32, i32) {
    %c0_i32 = arith.constant 0 : i32
    %c0_i32_0 = arith.constant 0 : i32
    %c0_i32_1 = arith.constant 0 : i32
    return %c0_i32, %c0_i32_0 : i32, i32
  }
  func.func @transform_4(%arg0: i32) -> (i32, i32, i32, i32) {
    %c0_i32 = arith.constant 0 : i32
    %c0_i32_0 = arith.constant 0 : i32
    %c0_i32_1 = arith.constant 0 : i32
    %c0_i32_2 = arith.constant 0 : i32
    return %arg0, %c0_i32, %c0_i32_0, %c0_i32_1 : i32, i32, i32, i32
  }
  func.func @transform_5(%arg0: i32) -> (i32, i32, i32) {
    %c0_i32 = arith.constant 0 : i32
    %c0_i32_0 = arith.constant 0 : i32
    %c0_i32_1 = arith.constant 0 : i32
    return %arg0, %c0_i32, %c0_i32_0 : i32, i32, i32
  }
}

</mosaic_0001>

<llo_original>
// kernel: residual_downsample_forward.1
$region0: #{residual_downsample_forward.1}
  #allocation0 [shape = 'u32[]', space=smem, size = 0x4, offset = 0x4, fixed_abs, tag = 'smem constant byte address 0x4 - core index']
  #allocation1 [shape = 'u32[144,128]{1,0:T(1,128)}', space=vmem, size = 0x12000, scoped, tag = 'internal scratch']
  #allocation2 [shape = 'f32[18,74]{1,0:T(8,128)}', space=vmem, size = 0x3000, scoped, tag = 'scratch operand']
  #allocation3 [shape = 'f32[1]{0:T(128)S(6)}', space=smem, size = 0x200, scoped, tag = 'scoped memory for residual_downsample_forward.1']
  %s0 = inlined_call_operand.<no memory space> [shape: f32[1], index: 0, kind: input, shape index: {}]
  %s1 = inlined_call_operand.vmem [shape: f32[36,72], index: 1, kind: input, shape index: {}]
  %s2 = inlined_call_operand.vmem [shape: f32[8,16], index: 2, kind: input, shape index: {}]
  %s3 = inlined_call_operand.vmem [shape: f32[64,64], index: 3, kind: input, shape index: {}]
  %s4 = inlined_call_operand.vmem [shape: f32[2,4,16,16], index: 4, kind: input, shape index: {}]
  %s5 = inlined_call_operand.vmem [shape: f32[2,8,64], index: 5, kind: output, shape index: {}]
  %s6 = sld [smem:[#allocation0]]
  $region53: #{residual_downsample_forward.1} parent=0
    _
  %s8 = ssub.s32 1, %s6
  %s9 = scalar_select 0, %s8, %s6
  %10 = sst [smem:[#allocation3]] %s0
  loop: start=0, step=1, limit=4
  $region2: #{residual_downsample_forward.1} parent=0 // loop_pre_header
    _
  $region3: #{residual_downsample_forward.1} parent=0 // loop_header
    %s12 = sphi 0, %s16
    %p13 = scmp.ge.s32.totalorder %s12, 4
    %s20 = sphi 0, %s20
    %s22 = sphi 0, %s20
    %s23 = sphi 0, %s22
    %s37 = sphi 0, %s23
    %s41 = sphi 0, %s41
    %s43 = sphi 0, %s41
    %s44 = sphi 0, %s43
    %s58 = sphi 0, %s44
    %s62 = sphi 0, %s62
    %s64 = sphi 0, %s62
    %s65 = sphi 0, %s64
    %s79 = sphi 0, %s65
    %s83 = sphi 0, %s83
    %s85 = sphi 0, %s83
    %s86 = sphi 0, %s85
    %s100 = sphi 0, %s86
    %s106 = sphi 0, %s108
    %s109 = sphi 0, %s106
    %s110 = sphi 0, %s109
    %s126 = sphi 0, %s110
    %s132 = sphi 0, %s134
    %s135 = sphi 0, %s132
    %s136 = sphi 0, %s135
    %s152 = sphi 0, %s136
  $region4: #{residual_downsample_forward.1} parent=0 // loop_header_branch
    %15 = sbr.rel (%p13) target = $region8
  $region5: #{residual_downsample_forward.1} parent=0 // loop_body
    %s17 = ssub.s32 %s12, 1
    %s18 = ssub.s32 %s12, 2
    %s19 = sadd.s32 %s12, 1
    %s21 = sadd.s32 %s20, 1
    %p24 = scmp.eq.s32.totalorder %s12, 1
    %p25 = scmp.ne.s32.totalorder %s20, %s22
    %p26 = scmp.eq.s32.totalorder %s12, 0
    %p27 = por %p25, %p26
    %p28 = scmp.ne.s32.totalorder %s20, %s22
    %p29 = scmp.eq.s32.totalorder %s17, 1
    %p30 = por %p28, %p29
    %p31 = scmp.ne.s32.totalorder %s22, %s23
    %p32 = scmp.eq.s32.totalorder %s17, 0
    %p33 = por %p31, %p32
    %p34 = scmp.ne.s32.totalorder %s22, %s23
    %p35 = scmp.eq.s32.totalorder %s18, 1
    %p36 = por %p34, %p35
    %p38 = scmp.ne.s32.totalorder %s23, %s37
    %p39 = scmp.eq.s32.totalorder %s18, 0
    %p40 = por %p38, %p39
    %s42 = sadd.s32 %s41, 1
    %p45 = scmp.eq.s32.totalorder %s12, 1
    %p46 = scmp.ne.s32.totalorder %s41, %s43
    %p47 = scmp.eq.s32.totalorder %s12, 0
    %p48 = por %p46, %p47
    %p49 = scmp.ne.s32.totalorder %s41, %s43
    %p50 = scmp.eq.s32.totalorder %s17, 1
    %p51 = por %p49, %p50
    %p52 = scmp.ne.s32.totalorder %s43, %s44
    %p53 = scmp.eq.s32.totalorder %s17, 0
    %p54 = por %p52, %p53
    %p55 = scmp.ne.s32.totalorder %s43, %s44
    %p56 = scmp.eq.s32.totalorder %s18, 1
    %p57 = por %p55, %p56
    %p59 = scmp.ne.s32.totalorder %s44, %s58
    %p60 = scmp.eq.s32.totalorder %s18, 0
    %p61 = por %p59, %p60
    %s63 = sadd.s32 %s62, 1
    %p66 = scmp.eq.s32.totalorder %s12, 1
    %p67 = scmp.ne.s32.totalorder %s62, %s64
    %p68 = scmp.eq.s32.totalorder %s12, 0
    %p69 = por %p67, %p68
    %p70 = scmp.ne.s32.totalorder %s62, %s64
    %p71 = scmp.eq.s32.totalorder %s17, 1
    %p72 = por %p70, %p71
    %p73 = scmp.ne.s32.totalorder %s64, %s65
    %p74 = scmp.eq.s32.totalorder %s17, 0
    %p75 = por %p73, %p74
    %p76 = scmp.ne.s32.totalorder %s64, %s65
    %p77 = scmp.eq.s32.totalorder %s18, 1
    %p78 = por %p76, %p77
    %p80 = scmp.ne.s32.totalorder %s65, %s79
    %p81 = scmp.eq.s32.totalorder %s18, 0
    %p82 = por %p80, %p81
    %s84 = sadd.s32 %s83, 1
    %p87 = scmp.eq.s32.totalorder %s12, 1
    %p88 = scmp.ne.s32.totalorder %s83, %s85
    %p89 = scmp.eq.s32.totalorder %s12, 0
    %p90 = por %p88, %p89
    %p91 = scmp.ne.s32.totalorder %s83, %s85
    %p92 = scmp.eq.s32.totalorder %s17, 1
    %p93 = por %p91, %p92
    %p94 = scmp.ne.s32.totalorder %s85, %s86
    %p95 = scmp.eq.s32.totalorder %s17, 0
    %p96 = por %p94, %p95
    %p97 = scmp.ne.s32.totalorder %s85, %s86
    %p98 = scmp.eq.s32.totalorder %s18, 1
    %p99 = por %p97, %p98
    %p101 = scmp.ne.s32.totalorder %s86, %s100
    %p102 = scmp.eq.s32.totalorder %s18, 0
    %p103 = por %p101, %p102
    %s104 = ssub.s32 %s12, %s19
    %p105 = scmp.eq.s32.totalorder %s104, 0
    %s107 = sadd.s32 %s106, 1
    %s108 = scalar_select %p105, %s106, %s107
    %p111 = pneg %p105
    %p112 = scmp.eq.s32.totalorder %s12, 1
    %p113 = por %p111, %p112
    %p114 = scmp.ne.s32.totalorder %s106, %s109
    %p115 = scmp.eq.s32.totalorder %s12, 0
    %p116 = por %p114, %p115
    %p117 = scmp.ne.s32.totalorder %s106, %s109
    %p118 = scmp.eq.s32.totalorder %s17, 1
    %p119 = por %p117, %p118
    %p120 = scmp.ne.s32.totalorder %s109, %s110
    %p121 = scmp.eq.s32.totalorder %s17, 0
    %p122 = por %p120, %p121
    %p123 = scmp.ne.s32.totalorder %s109, %s110
    %p124 = scmp.eq.s32.totalorder %s18, 1
    %p125 = por %p123, %p124
    %p127 = scmp.ne.s32.totalorder %s110, %s126
    %p128 = scmp.eq.s32.totalorder %s18, 0
    %p129 = por %p127, %p128
    %s130 = ssub.s32 %s12, %s19
    %p131 = scmp.eq.s32.totalorder %s130, 0
    %s133 = sadd.s32 %s132, 1
    %s134 = scalar_select %p131, %s132, %s133
    %p137 = pneg %p131
    %p138 = scmp.eq.s32.totalorder %s12, 1
    %p139 = por %p137, %p138
    %p140 = scmp.ne.s32.totalorder %s132, %s135
    %p141 = scmp.eq.s32.totalorder %s12, 0
    %p142 = por %p140, %p141
    %p143 = scmp.ne.s32.totalorder %s132, %s135
    %p144 = scmp.eq.s32.totalorder %s17, 1
    %p145 = por %p143, %p144
    %p146 = scmp.ne.s32.totalorder %s135, %s136
    %p147 = scmp.eq.s32.totalorder %s17, 0
    %p148 = por %p146, %p147
    %p149 = scmp.ne.s32.totalorder %s135, %s136
    %p150 = scmp.eq.s32.totalorder %s18, 1
    %p151 = por %p149, %p150
    %p153 = scmp.ne.s32.totalorder %s136, %s152
    %p154 = scmp.eq.s32.totalorder %s18, 0
    %p155 = por %p153, %p154
    %p156 = scmp.le.s32.totalorder 1, %s12
    %p157 = scmp.lt.s32.totalorder %s12, 3
    %p158 = pnand %p156, %p157
    %p159 = pneg %p158
    // Predicated region
    $region9: #{residual_downsample_forward.1} parent=5 // pred_check
      _
    $region10: #{residual_downsample_forward.1} parent=5 // pred_check_branch
      %161 = sbr.rel (%p158) target = $region12
    $region11: #{residual_downsample_forward.1} parent=5 // pred_region
      %s162 = ssub.s32 %s12, 1
      // Predicated region
      $region13: #{residual_downsample_forward.1} parent=11 // pred_check
        %p163 = pneg %p33
      $region14: #{residual_downsample_forward.1} parent=11 // pred_check_branch
        %165 = sbr.rel (%p163) target = $region16
      $region15: #{residual_downsample_forward.1} parent=11 // pred_region
        _
      $region16: #{residual_downsample_forward.1} parent=11 // pred_fallthru
        _
      // Predicated region
      $region17: #{residual_downsample_forward.1} parent=11 // pred_check
        %p166 = pneg %p54
      $region18: #{residual_downsample_forward.1} parent=11 // pred_check_branch
        %168 = sbr.rel (%p166) target = $region20
      $region19: #{residual_downsample_forward.1} parent=11 // pred_region
        _
      $region20: #{residual_downsample_forward.1} parent=11 // pred_fallthru
        _
      // Predicated region
      $region21: #{residual_downsample_forward.1} parent=11 // pred_check
        %p169 = pneg %p75
      $region22: #{residual_downsample_forward.1} parent=11 // pred_check_branch
        %171 = sbr.rel (%p169) target = $region24
      $region23: #{residual_downsample_forward.1} parent=11 // pred_region
        _
      $region24: #{residual_downsample_forward.1} parent=11 // pred_fallthru
        _
      // Predicated region
      $region25: #{residual_downsample_forward.1} parent=11 // pred_check
        %p172 = pneg %p96
      $region26: #{residual_downsample_forward.1} parent=11 // pred_check_branch
        %174 = sbr.rel (%p172) target = $region28
      $region27: #{residual_downsample_forward.1} parent=11 // pred_region
        _
      $region28: #{residual_downsample_forward.1} parent=11 // pred_fallthru
        _
    $region12: #{residual_downsample_forward.1} parent=5 // pred_fallthru
      _
    %p175 = scmp.lt.s32.totalorder %s12, 2
    // Predicated region
    $region29: #{residual_downsample_forward.1} parent=5 // pred_check
      %p176 = pneg %p175
    $region30: #{residual_downsample_forward.1} parent=5 // pred_check_branch
      %178 = sbr.rel (%p176) target = $region32
    $region31: #{residual_downsample_forward.1} parent=5 // pred_region
      // Predicated region
      $region33: #{residual_downsample_forward.1} parent=31 // pred_check
        %p179 = pneg %p116
      $region34: #{residual_downsample_forward.1} parent=31 // pred_check_branch
        %181 = sbr.rel (%p179) target = $region36
      $region35: #{residual_downsample_forward.1} parent=31 // pred_region
        %p182 = scmp.lt.s32.totalorder %s12, 1
        %s183 = scalar_select %p182, %s12, 1
        %s184 = smul.addr %s183, 8
        %s185 = smul.addr %s184, 8
        %s186 = scalar_lea.vmem %s4, %s185
      $region36: #{residual_downsample_forward.1} parent=31 // pred_fallthru
        _
    $region32: #{residual_downsample_forward.1} parent=5 // pred_fallthru
      _
    %p187 = scmp.le.s32.totalorder 1, %s12
    %p188 = scmp.lt.s32.totalorder %s12, 3
    %p189 = pnand %p187, %p188
    %p190 = pneg %p189
    // Predicated region
    $region37: #{residual_downsample_forward.1} parent=5 // pred_check
      _
    $region38: #{residual_downsample_forward.1} parent=5 // pred_check_branch
      %192 = sbr.rel (%p189) target = $region40
    $region39: #{residual_downsample_forward.1} parent=5 // pred_region
      %s193 = ssub.s32 %s12, 1
      %p194 = pneg %p33
      %p195 = pneg %p30
      %p196 = pneg %p54
      %p197 = pneg %p51
      %p198 = pneg %p75
      %p199 = pneg %p72
      %p200 = pneg %p96
      %p201 = pneg %p93
      %p202 = scmp.lt.s32.totalorder %s17, 1
      %s203 = scalar_select %p202, %s17, 1
      %s204 = smul.addr %s203, 8
      %s205 = smul.addr %s204, 8
      %s206 = scalar_lea.vmem %s4, %s205
      %p207 = pneg %p122
      %p208 = pneg %p119
      %p209 = pneg %p148
      %p210 = pneg %p145
      %p211 = scmp.lt.s32.totalorder %s17, 1
      %s212 = scalar_select %p211, %s17, 1
      %s213 = smul.addr %s212, 8
      %s214 = scalar_lea.vmem %s5, %s213
      %p215 = scmp.lt.s32.totalorder %s17, 1
      %s216 = scalar_select %p215, %s17, 1
      %s217 = smul.addr %s216, 8
      %s218 = smul.addr %s217, 8
      %s219 = scalar_lea.vmem %s4, %s218
      %p220 = scmp.lt.s32.totalorder %s17, 1
      %s221 = scalar_select %p220, %s17, 1
      %s222 = smul.addr %s221, 8
      %s223 = scalar_lea.vmem %s5, %s222
      %s224 = sld [smem:[#allocation3]]
      %v225 = vld [vmem:[%s2] sm:$0xff]
      %v226 = vld [vmem:[%s3] sm:$0xff]
      %v227 = vld [vmem:[%s3 + $0x8] sm:$0xff]
      %v228 = vld [vmem:[%s3 + $0x10] sm:$0xff]
      %v229 = vld [vmem:[%s3 + $0x18] sm:$0xff]
      %v230 = vld [vmem:[%s3 + $0x20] sm:$0xff]
      %v231 = vld [vmem:[%s3 + $0x28] sm:$0xff]
      %v232 = vld [vmem:[%s3 + $0x30] sm:$0xff]
      %v233 = vld [vmem:[%s3 + $0x38] sm:$0xff]
      %vm234 = vcmask 605184
      %235 = vst.msk [vmem:[#allocation2] sm:$0xff] %vm234, 0.0
      %236 = vst.msk [vmem:[#allocation2 + $0x8] sm:$0xff] %vm234, 0.0
      %vm237 = vcmask 599040
      %238 = vst.msk [vmem:[#allocation2 + $0x10] sm:$0x3] %vm237, 0.0
      %v239 = vld [vmem:[%s219] sm:$0xff]
      %v240 = vld [vmem:[%s219 + $0x8] sm:$0xff]
      %243 = vrot.lane.b32.xlu0 %v239, 1
      %v244 = vpop.permute.xlu0 %243
      %245 = vrot.lane.b32.xlu0 %v240, 1
      %v246 = vpop.permute.xlu0 %245
      %vm249 = vcmask 138248
      %250 = vst.msk [vmem:[#allocation2 + $0x1] sm:$0xff] %vm249, %v244
      %251 = vst.msk [vmem:[#allocation2 + $0x9] sm:$0xff] %vm249, %v246
      %s252 = scalar_lea.vmem %s219, 16
      %v253 = vld [vmem:[%s252] sm:$0xff]
      %v254 = vld [vmem:[%s252 + $0x8] sm:$0xff]
      %257 = vrot.lane.b32.xlu0 %v253, 19
      %v258 = vpop.permute.xlu0 %257
      %259 = vrot.lane.b32.xlu0 %v254, 19
      %v260 = vpop.permute.xlu0 %259
      %vm263 = vcmask 285848
      %264 = vst.msk [vmem:[#allocation2 + $0x1] sm:$0xff] %vm263, %v258
      %265 = vst.msk [vmem:[#allocation2 + $0x9] sm:$0xff] %vm263, %v260
      %s266 = scalar_lea.vmem %s219, 32
      %v267 = vld [vmem:[%s266] sm:$0xff]
      %v268 = vld [vmem:[%s266 + $0x8] sm:$0xff]
      %271 = vrot.lane.b32.xlu0 %v267, 37
      %v272 = vpop.permute.xlu0 %271
      %273 = vrot.lane.b32.xlu0 %v268, 37
      %v274 = vpop.permute.xlu0 %273
      %vm277 = vcmask 433448
      %278 = vst.msk [vmem:[#allocation2 + $0x1] sm:$0xff] %vm277, %v272
      %279 = vst.msk [vmem:[#allocation2 + $0x9] sm:$0xff] %vm277, %v274
      %s280 = scalar_lea.vmem %s219, 48
      %v281 = vld [vmem:[%s280] sm:$0xff]
      %v282 = vld [vmem:[%s280 + $0x8] sm:$0xff]
      %285 = vrot.lane.b32.xlu0 %v281, 55
      %v286 = vpop.permute.xlu0 %285
      %287 = vrot.lane.b32.xlu0 %v282, 55
      %v288 = vpop.permute.xlu0 %287
      %vm291 = vcmask 581048
      %292 = vst.msk [vmem:[#allocation2 + $0x1] sm:$0xff] %vm291, %v286
      %293 = vst.msk [vmem:[#allocation2 + $0x9] sm:$0xff] %vm291, %v288
      %v294 = vld [vmem:[#allocation2] sm:$0xff]
      %v295 = vld [vmem:[#allocation2 + $0x8] sm:$0xff]
      %v296 = vld [vmem:[%s1] sm:$0x1]
      %v297 = vlaneseq
      %v298 = vshrl.u32 %v297, 7
      %v299 = vsub.s32 0, %v298
      %v300 = vrot.slane %v296, %v299
      %v301 = vmul.f32 %v300, %v294
      %v302 = vmul.f32 %v300, %v295
      %v303 = vadd.f32 %v301, 0.0
      %v304 = vadd.f32 %v302, 0.0
      %v305 = vld [vmem:[%s1 + $0x9] sm:$0x1]
      %v306 = vlaneseq
      %v307 = vshrl.u32 %v306, 7
      %v308 = vsub.s32 0, %v307
      %v309 = vrot.slane %v305, %v308
      %v310 = vmul.f32 %v309, %v294
      %v311 = vmul.f32 %v309, %v295
      %v312 = vadd.f32 %v310, 0.0
      %v313 = vadd.f32 %v311, 0.0
      %v314 = vld [vmem:[%s1 + $0x12] sm:$0x1]
      %v315 = vlaneseq
      %v316 = vshrl.u32 %v315, 7
      %v317 = vsub.s32 0, %v316
      %v318 = vrot.slane %v314, %v317
      %v319 = vmul.f32 %v318, %v294
      %v320 = vmul.f32 %v318, %v295
      %v321 = vadd.f32 %v319, 0.0
      %v322 = vadd.f32 %v320, 0.0
      %v323 = vld [vmem:[%s1 + $0x1b] sm:$0x1]
      %v324 = vlaneseq
      %v325 = vshrl.u32 %v324, 7
      %v326 = vsub.s32 0, %v325
      %v327 = vrot.slane %v323, %v326
      %v328 = vmul.f32 %v327, %v294
      %v329 = vmul.f32 %v327, %v295
      %v330 = vadd.f32 %v328, 0.0
      %v331 = vadd.f32 %v329, 0.0
      %v332 = vld [vmem:[%s1 + $0x1] sm:$0x1]
      %v333 = vlaneseq
      %v334 = vshrl.u32 %v333, 7
      %v335 = vsub.s32 0, %v334
      %v336 = vrot.slane %v332, %v335
      %339 = vrot.lane.b32.xlu0 %v294, 127
      %v340 = vpop.permute.xlu0 %339
      %341 = vrot.lane.b32.xlu0 %v295, 127
      %v342 = vpop.permute.xlu0 %341
      %v345 = vmul.f32 %v336, %v340
      %v346 = vmul.f32 %v336, %v342
      %v347 = vadd.f32 %v303, %v345
      %v348 = vadd.f32 %v304, %v346
      %v349 = vld [vmem:[%s1 + $0xa] sm:$0x1]
      %v350 = vlaneseq
      %v351 = vshrl.u32 %v350, 7
      %v352 = vsub.s32 0, %v351
      %v353 = vrot.slane %v349, %v352
      %v354 = vmul.f32 %v353, %v340
      %v355 = vmul.f32 %v353, %v342
      %v356 = vadd.f32 %v312, %v354
      %v357 = vadd.f32 %v313, %v355
      %v358 = vld [vmem:[%s1 + $0x13] sm:$0x1]
      %v359 = vlaneseq
      %v360 = vshrl.u32 %v359, 7
      %v361 = vsub.s32 0, %v360
      %v362 = vrot.slane %v358, %v361
      %v363 = vmul.f32 %v362, %v340
      %v364 = vmul.f32 %v362, %v342
      %v365 = vadd.f32 %v321, %v363
      %v366 = vadd.f32 %v322, %v364
      %v367 = vld [vmem:[%s1 + $0x1c] sm:$0x1]
      %v368 = vlaneseq
      %v369 = vshrl.u32 %v368, 7
      %v370 = vsub.s32 0, %v369
      %v371 = vrot.slane %v367, %v370
      %v372 = vmul.f32 %v371, %v340
      %v373 = vmul.f32 %v371, %v342
      %v374 = vadd.f32 %v330, %v372
      %v375 = vadd.f32 %v331, %v373
      %v376 = vld [vmem:[%s1 + $0x2] sm:$0x1]
      %v377 = vlaneseq
      %v378 = vshrl.u32 %v377, 7
      %v379 = vsub.s32 0, %v378
      %v380 = vrot.slane %v376, %v379
      %381 = vrot.lane.b32.xlu0 %v294, 126
      %v382 = vpop.permute.xlu0 %381
      %383 = vrot.lane.b32.xlu0 %v295, 126
      %v384 = vpop.permute.xlu0 %383
      %v387 = vmul.f32 %v380, %v382
      %v388 = vmul.f32 %v380, %v384
      %v389 = vadd.f32 %v347, %v387
      %v390 = vadd.f32 %v348, %v388
      %v391 = vld [vmem:[%s1 + $0xb] sm:$0x1]
      %v392 = vlaneseq
      %v393 = vshrl.u32 %v392, 7
      %v394 = vsub.s32 0, %v393
      %v395 = vrot.slane %v391, %v394
      %v396 = vmul.f32 %v395, %v382
      %v397 = vmul.f32 %v395, %v384
      %v398 = vadd.f32 %v356, %v396
      %v399 = vadd.f32 %v357, %v397
      %v400 = vld [vmem:[%s1 + $0x14] sm:$0x1]
      %v401 = vlaneseq
      %v402 = vshrl.u32 %v401, 7
      %v403 = vsub.s32 0, %v402
      %v404 = vrot.slane %v400, %v403
      %v405 = vmul.f32 %v404, %v382
      %v406 = vmul.f32 %v404, %v384
      %v407 = vadd.f32 %v365, %v405
      %v408 = vadd.f32 %v366, %v406
      %v409 = vld [vmem:[%s1 + $0x1d] sm:$0x1]
      %v410 = vlaneseq
      %v411 = vshrl.u32 %v410, 7
      %v412 = vsub.s32 0, %v411
      %v413 = vrot.slane %v409, %v412
      %v414 = vmul.f32 %v413, %v382
      %v415 = vmul.f32 %v413, %v384
      %v416 = vadd.f32 %v374, %v414
      %v417 = vadd.f32 %v375, %v415
      %v418 = vld [vmem:[#allocation2 + $0x1] sm:$0xff]
      %v419 = vld [vmem:[#allocation2 + $0x9] sm:$0xff]
      %v420 = vld [vmem:[%s1 + $0x3] sm:$0x1]
      %v421 = vlaneseq
      %v422 = vshrl.u32 %v421, 7
      %v423 = vsub.s32 0, %v422
      %v424 = vrot.slane %v420, %v423
      %v425 = vmul.f32 %v424, %v418
      %v426 = vmul.f32 %v424, %v419
      %v427 = vadd.f32 %v389, %v425
      %v428 = vadd.f32 %v390, %v426
      %v429 = vld [vmem:[%s1 + $0xc] sm:$0x1]
      %v430 = vlaneseq
      %v431 = vshrl.u32 %v430, 7
      %v432 = vsub.s32 0, %v431
      %v433 = vrot.slane %v429, %v432
      %v434 = vmul.f32 %v433, %v418
      %v435 = vmul.f32 %v433, %v419
      %v436 = vadd.f32 %v398, %v434
      %v437 = vadd.f32 %v399, %v435
      %v438 = vld [vmem:[%s1 + $0x15] sm:$0x1]
      %v439 = vlaneseq
      %v440 = vshrl.u32 %v439, 7
      %v441 = vsub.s32 0, %v440
      %v442 = vrot.slane %v438, %v441
      %v443 = vmul.f32 %v442, %v418
      %v444 = vmul.f32 %v442, %v419
      %v445 = vadd.f32 %v407, %v443
      %v446 = vadd.f32 %v408, %v444
      %v447 = vld [vmem:[%s1 + $0x1e] sm:$0x1]
      %v448 = vlaneseq
      %v449 = vshrl.u32 %v448, 7
      %v450 = vsub.s32 0, %v449
      %v451 = vrot.slane %v447, %v450
      %v452 = vmul.f32 %v451, %v418
      %v453 = vmul.f32 %v451, %v419
      %v454 = vadd.f32 %v416, %v452
      %v455 = vadd.f32 %v417, %v453
      %v456 = vld [vmem:[%s1 + $0x4] sm:$0x1]
      %v457 = vlaneseq
      %v458 = vshrl.u32 %v457, 7
      %v459 = vsub.s32 0, %v458
      %v460 = vrot.slane %v456, %v459
      %463 = vrot.lane.b32.xlu0 %v418, 127
      %v464 = vpop.permute.xlu0 %463
      %465 = vrot.lane.b32.xlu0 %v419, 127
      %v466 = vpop.permute.xlu0 %465
      %v469 = vmul.f32 %v460, %v464
      %v470 = vmul.f32 %v460, %v466
      %v471 = vadd.f32 %v427, %v469
      %v472 = vadd.f32 %v428, %v470
      %v473 = vld [vmem:[%s1 + $0xd] sm:$0x1]
      %v474 = vlaneseq
      %v475 = vshrl.u32 %v474, 7
      %v476 = vsub.s32 0, %v475
      %v477 = vrot.slane %v473, %v476
      %v478 = vmul.f32 %v477, %v464
      %v479 = vmul.f32 %v477, %v466
      %v480 = vadd.f32 %v436, %v478
      %v481 = vadd.f32 %v437, %v479
      %v482 = vld [vmem:[%s1 + $0x16] sm:$0x1]
      %v483 = vlaneseq
      %v484 = vshrl.u32 %v483, 7
      %v485 = vsub.s32 0, %v484
      %v486 = vrot.slane %v482, %v485
      %v487 = vmul.f32 %v486, %v464
      %v488 = vmul.f32 %v486, %v466
      %v489 = vadd.f32 %v445, %v487
      %v490 = vadd.f32 %v446, %v488
      %v491 = vld [vmem:[%s1 + $0x1f] sm:$0x1]
      %v492 = vlaneseq
      %v493 = vshrl.u32 %v492, 7
      %v494 = vsub.s32 0, %v493
      %v495 = vrot.slane %v491, %v494
      %v496 = vmul.f32 %v495, %v464
      %v497 = vmul.f32 %v495, %v466
      %v498 = vadd.f32 %v454, %v496
      %v499 = vadd.f32 %v455, %v497
      %v500 = vld [vmem:[%s1 + $0x5] sm:$0x1]
      %v501 = vlaneseq
      %v502 = vshrl.u32 %v501, 7
      %v503 = vsub.s32 0, %v502
      %v504 = vrot.slane %v500, %v503
      %505 = vrot.lane.b32.xlu0 %v418, 126
      %v506 = vpop.permute.xlu0 %505
      %507 = vrot.lane.b32.xlu0 %v419, 126
      %v508 = vpop.permute.xlu0 %507
      %v511 = vmul.f32 %v504, %v506
      %v512 = vmul.f32 %v504, %v508
      %v513 = vadd.f32 %v471, %v511
      %v514 = vadd.f32 %v472, %v512
      %v515 = vld [vmem:[%s1 + $0xe] sm:$0x1]
      %v516 = vlaneseq
      %v517 = vshrl.u32 %v516, 7
      %v518 = vsub.s32 0, %v517
      %v519 = vrot.slane %v515, %v518
      %v520 = vmul.f32 %v519, %v506
      %v521 = vmul.f32 %v519, %v508
      %v522 = vadd.f32 %v480, %v520
      %v523 = vadd.f32 %v481, %v521
      %v524 = vld [vmem:[%s1 + $0x17] sm:$0x1]
      %v525 = vlaneseq
      %v526 = vshrl.u32 %v525, 7
      %v527 = vsub.s32 0, %v526
      %v528 = vrot.slane %v524, %v527
      %v529 = vmul.f32 %v528, %v506
      %v530 = vmul.f32 %v528, %v508
      %v531 = vadd.f32 %v489, %v529
      %v532 = vadd.f32 %v490, %v530
      %v533 = vld [vmem:[%s1 + $0x20] sm:$0x1]
      %v534 = vlaneseq
      %v535 = vshrl.u32 %v534, 7
      %v536 = vsub.s32 0, %v535
      %v537 = vrot.slane %v533, %v536
      %v538 = vmul.f32 %v537, %v506
      %v539 = vmul.f32 %v537, %v508
      %v540 = vadd.f32 %v498, %v538
      %v541 = vadd.f32 %v499, %v539
      %v542 = vld [vmem:[#allocation2 + $0x2] sm:$0xff]
      %v543 = vld [vmem:[#allocation2 + $0xa] sm:$0xff]
      %v544 = vld [vmem:[%s1 + $0x6] sm:$0x1]
      %v545 = vlaneseq
      %v546 = vshrl.u32 %v545, 7
      %v547 = vsub.s32 0, %v546
      %v548 = vrot.slane %v544, %v547
      %v549 = vmul.f32 %v548, %v542
      %v550 = vmul.f32 %v548, %v543
      %v551 = vadd.f32 %v513, %v549
      %v552 = vadd.f32 %v514, %v550
      %v553 = vld [vmem:[%s1 + $0xf] sm:$0x1]
      %v554 = vlaneseq
      %v555 = vshrl.u32 %v554, 7
      %v556 = vsub.s32 0, %v555
      %v557 = vrot.slane %v553, %v556
      %v558 = vmul.f32 %v557, %v542
      %v559 = vmul.f32 %v557, %v543
      %v560 = vadd.f32 %v522, %v558
      %v561 = vadd.f32 %v523, %v559
      %v562 = vld [vmem:[%s1 + $0x18] sm:$0x1]
      %v563 = vlaneseq
      %v564 = vshrl.u32 %v563, 7
      %v565 = vsub.s32 0, %v564
      %v566 = vrot.slane %v562, %v565
      %v567 = vmul.f32 %v566, %v542
      %v568 = vmul.f32 %v566, %v543
      %v569 = vadd.f32 %v531, %v567
      %v570 = vadd.f32 %v532, %v568
      %v571 = vld [vmem:[%s1 + $0x21] sm:$0x1]
      %v572 = vlaneseq
      %v573 = vshrl.u32 %v572, 7
      %v574 = vsub.s32 0, %v573
      %v575 = vrot.slane %v571, %v574
      %v576 = vmul.f32 %v575, %v542
      %v577 = vmul.f32 %v575, %v543
      %v578 = vadd.f32 %v540, %v576
      %v579 = vadd.f32 %v541, %v577
      %v580 = vld [vmem:[%s1 + $0x7] sm:$0x1]
      %v581 = vlaneseq
      %v582 = vshrl.u32 %v581, 7
      %v583 = vsub.s32 0, %v582
      %v584 = vrot.slane %v580, %v583
      %587 = vrot.lane.b32.xlu0 %v542, 127
      %v588 = vpop.permute.xlu0 %587
      %589 = vrot.lane.b32.xlu0 %v543, 127
      %v590 = vpop.permute.xlu0 %589
      %v593 = vmul.f32 %v584, %v588
      %v594 = vmul.f32 %v584, %v590
      %v595 = vadd.f32 %v551, %v593
      %v596 = vadd.f32 %v552, %v594
      %v597 = vld [vmem:[%s1 + $0x10] sm:$0x1]
      %v598 = vlaneseq
      %v599 = vshrl.u32 %v598, 7
      %v600 = vsub.s32 0, %v599
      %v601 = vrot.slane %v597, %v600
      %v602 = vmul.f32 %v601, %v588
      %v603 = vmul.f32 %v601, %v590
      %v604 = vadd.f32 %v560, %v602
      %v605 = vadd.f32 %v561, %v603
      %v606 = vld [vmem:[%s1 + $0x19] sm:$0x1]
      %v607 = vlaneseq
      %v608 = vshrl.u32 %v607, 7
      %v609 = vsub.s32 0, %v608
      %v610 = vrot.slane %v606, %v609
      %v611 = vmul.f32 %v610, %v588
      %v612 = vmul.f32 %v610, %v590
      %v613 = vadd.f32 %v569, %v611
      %v614 = vadd.f32 %v570, %v612
      %v615 = vld [vmem:[%s1 + $0x22] sm:$0x1]
      %v616 = vlaneseq
      %v617 = vshrl.u32 %v616, 7
      %v618 = vsub.s32 0, %v617
      %v619 = vrot.slane %v615, %v618
      %v620 = vmul.f32 %v619, %v588
      %v621 = vmul.f32 %v619, %v590
      %v622 = vadd.f32 %v578, %v620
      %v623 = vadd.f32 %v579, %v621
      %v624 = vld [vmem:[%s1 + $0x8] sm:$0x1]
      %v625 = vlaneseq
      %v626 = vshrl.u32 %v625, 7
      %v627 = vsub.s32 0, %v626
      %v628 = vrot.slane %v624, %v627
      %629 = vrot.lane.b32.xlu0 %v542, 126
      %v630 = vpop.permute.xlu0 %629
      %631 = vrot.lane.b32.xlu0 %v543, 126
      %v632 = vpop.permute.xlu0 %631
      %v635 = vmul.f32 %v628, %v630
      %v636 = vmul.f32 %v628, %v632
      %v637 = vadd.f32 %v595, %v635
      %v638 = vadd.f32 %v596, %v636
      %v639 = vld [vmem:[%s1 + $0x11] sm:$0x1]
      %v640 = vlaneseq
      %v641 = vshrl.u32 %v640, 7
      %v642 = vsub.s32 0, %v641
      %v643 = vrot.slane %v639, %v642
      %v644 = vmul.f32 %v643, %v630
      %v645 = vmul.f32 %v643, %v632
      %v646 = vadd.f32 %v604, %v644
      %v647 = vadd.f32 %v605, %v645
      %v648 = vld [vmem:[%s1 + $0x1a] sm:$0x1]
      %v649 = vlaneseq
      %v650 = vshrl.u32 %v649, 7
      %v651 = vsub.s32 0, %v650
      %v652 = vrot.slane %v648, %v651
      %v653 = vmul.f32 %v652, %v630
      %v654 = vmul.f32 %v652, %v632
      %v655 = vadd.f32 %v613, %v653
      %v656 = vadd.f32 %v614, %v654
      %v657 = vld [vmem:[%s1 + $0x23] sm:$0x1]
      %v658 = vlaneseq
      %v659 = vshrl.u32 %v658, 7
      %v660 = vsub.s32 0, %v659
      %v661 = vrot.slane %v657, %v660
      %v662 = vmul.f32 %v661, %v630
      %v663 = vmul.f32 %v661, %v632
      %v664 = vadd.f32 %v622, %v662
      %v665 = vadd.f32 %v623, %v663
      %668 = vrot.lane.b32.xlu0 %v637, 110
      %v669 = vpop.permute.xlu0 %668
      %670 = vrot.lane.b32.xlu0 %v638, 110
      %v671 = vpop.permute.xlu0 %670
      %v674 = vadd.f32 %v637, %v669
      %v675 = vadd.f32 %v638, %v671
      %676 = vrot.lane.b32.xlu0 %v637, 92
      %v677 = vpop.permute.xlu0 %676
      %678 = vrot.lane.b32.xlu0 %v638, 92
      %v679 = vpop.permute.xlu0 %678
      %v682 = vadd.f32 %v674, %v677
      %v683 = vadd.f32 %v675, %v679
      %684 = vrot.lane.b32.xlu0 %v637, 74
      %v685 = vpop.permute.xlu0 %684
      %686 = vrot.lane.b32.xlu0 %v638, 74
      %v687 = vpop.permute.xlu0 %686
      %v690 = vadd.f32 %v682, %v685
      %v691 = vadd.f32 %v683, %v687
      %694 = vrot.lane.b32.xlu0 %v646, 110
      %v695 = vpop.permute.xlu0 %694
      %696 = vrot.lane.b32.xlu0 %v647, 110
      %v697 = vpop.permute.xlu0 %696
      %v700 = vadd.f32 %v646, %v695
      %v701 = vadd.f32 %v647, %v697
      %702 = vrot.lane.b32.xlu0 %v646, 92
      %v703 = vpop.permute.xlu0 %702
      %704 = vrot.lane.b32.xlu0 %v647, 92
      %v705 = vpop.permute.xlu0 %704
      %v708 = vadd.f32 %v700, %v703
      %v709 = vadd.f32 %v701, %v705
      %710 = vrot.lane.b32.xlu0 %v646, 74
      %v711 = vpop.permute.xlu0 %710
      %712 = vrot.lane.b32.xlu0 %v647, 74
      %v713 = vpop.permute.xlu0 %712
      %v716 = vadd.f32 %v708, %v711
      %v717 = vadd.f32 %v709, %v713
      %720 = vrot.lane.b32.xlu0 %v655, 110
      %v721 = vpop.permute.xlu0 %720
      %722 = vrot.lane.b32.xlu0 %v656, 110
      %v723 = vpop.permute.xlu0 %722
      %v726 = vadd.f32 %v655, %v721
      %v727 = vadd.f32 %v656, %v723
      %728 = vrot.lane.b32.xlu0 %v655, 92
      %v729 = vpop.permute.xlu0 %728
      %730 = vrot.lane.b32.xlu0 %v656, 92
      %v731 = vpop.permute.xlu0 %730
      %v734 = vadd.f32 %v726, %v729
      %v735 = vadd.f32 %v727, %v731
      %736 = vrot.lane.b32.xlu0 %v655, 74
      %v737 = vpop.permute.xlu0 %736
      %738 = vrot.lane.b32.xlu0 %v656, 74
      %v739 = vpop.permute.xlu0 %738
      %v742 = vadd.f32 %v734, %v737
      %v743 = vadd.f32 %v735, %v739
      %746 = vrot.lane.b32.xlu0 %v664, 110
      %v747 = vpop.permute.xlu0 %746
      %748 = vrot.lane.b32.xlu0 %v665, 110
      %v749 = vpop.permute.xlu0 %748
      %v752 = vadd.f32 %v664, %v747
      %v753 = vadd.f32 %v665, %v749
      %754 = vrot.lane.b32.xlu0 %v664, 92
      %v755 = vpop.permute.xlu0 %754
      %756 = vrot.lane.b32.xlu0 %v665, 92
      %v757 = vpop.permute.xlu0 %756
      %v760 = vadd.f32 %v752, %v755
      %v761 = vadd.f32 %v753, %v757
      %762 = vrot.lane.b32.xlu0 %v664, 74
      %v763 = vpop.permute.xlu0 %762
      %764 = vrot.lane.b32.xlu0 %v665, 74
      %v765 = vpop.permute.xlu0 %764
      %v768 = vadd.f32 %v760, %v763
      %v769 = vadd.f32 %v761, %v765
      %772 = vrot.lane.b32.xlu0 %v716, 16
      %v773 = vpop.permute.xlu0 %772
      %774 = vrot.lane.b32.xlu0 %v717, 16
      %v775 = vpop.permute.xlu0 %774
      %780 = vrot.lane.b32.xlu0 %v742, 32
      %v781 = vpop.permute.xlu0 %780
      %782 = vrot.lane.b32.xlu0 %v743, 32
      %v783 = vpop.permute.xlu0 %782
      %788 = vrot.lane.b32.xlu0 %v768, 48
      %v789 = vpop.permute.xlu0 %788
      %790 = vrot.lane.b32.xlu0 %v769, 48
      %v791 = vpop.permute.xlu0 %790
      %vm794 = vcmask 130048
      %v795 = vsel %vm794, %v690, %v773
      %v796 = vsel %vm794, %v691, %v775
      %vm797 = vcmask 261120
      %v798 = vsel %vm797, %v795, %v781
      %v799 = vsel %vm797, %v796, %v783
      %vm800 = vcmask 392192
      %v801 = vsel %vm800, %v798, %v789
      %v802 = vsel %vm800, %v799, %v791
      %vm803 = vcmp.gt.f32.partialorder %v801, 0.0
      %vm804 = vcmp.gt.f32.partialorder %v802, 0.0
      %v805 = vstv %s224
      %v806 = vmul.f32 %v805, %v801
      %v807 = vmul.f32 %v805, %v802
      %v808 = vsel %vm803, %v801, %v806
      %v809 = vsel %vm804, %v802, %v807
      %v811 = vsel %vm794, %v225, 0
      %813 = vmatprep.subr.mxu0 0.0
      %814 = vmatpush1.msra.mxu0 %v808
      %815 = vmatprep.subr.mxu0 0.0
      %816 = vmatpush1.msra.mxu0 %v809
      %817 = vmatprep.subr.mxu0 0.0
      %818 = vmatpush1.msra.mxu0 0.0
      %819 = vmatprep.subr.mxu0 0.0
      %820 = vmatpush1.msra.mxu0 0.0
      %821 = vmatprep.subr.mxu0 0.0
      %822 = vmatpush1.msra.mxu0 0.0
      %823 = vmatprep.subr.mxu0 0.0
      %824 = vmatpush1.msra.mxu0 0.0
      %825 = vmatprep.subr.mxu0 0.0
      %826 = vmatpush1.msra.mxu0 0.0
      %827 = vmatprep.subr.mxu0 0.0
      %828 = vmatpush1.msra.mxu0 0.0
      %829 = vmatprep.subr.mxu0 0.0
      %830 = vmatpush1.msra.mxu0 0.0
      %831 = vmatprep.subr.mxu0 0.0
      %832 = vmatpush1.msra.mxu0 0.0
      %833 = vmatprep.subr.mxu0 0.0
      %834 = vmatpush1.msra.mxu0 0.0
      %835 = vmatprep.subr.mxu0 0.0
      %836 = vmatpush1.msra.mxu0 0.0
      %837 = vmatprep.subr.mxu0 0.0
      %838 = vmatpush1.msra.mxu0 0.0
      %839 = vmatprep.subr.mxu0 0.0
      %840 = vmatpush1.msra.mxu0 0.0
      %841 = vmatprep.subr.mxu0 0.0
      %842 = vmatpush1.msra.mxu0 0.0
      %843 = vmatprep.subr.mxu0 0.0
      %844 = vmatpush1.msra.mxu0 0.0
      %845 = vmatprep.subr.mxu0 0.0
      %846 = vmatpush1.msra.mxu0 0.0
      %847 = vmatprep.subr.mxu0 0.0
      %848 = vmatpush1.msra.mxu0 0.0
      %849 = vmatprep.subr.mxu0 0.0
      %850 = vmatpush1.msra.mxu0 0.0
      %851 = vmatprep.subr.mxu0 0.0
      %852 = vmatpush1.msra.mxu0 0.0
      %853 = vmatprep.subr.mxu0 0.0
      %854 = vmatpush1.msra.mxu0 0.0
      %855 = vmatprep.subr.mxu0 0.0
      %856 = vmatpush1.msra.mxu0 0.0
      %857 = vmatprep.subr.mxu0 0.0
      %858 = vmatpush1.msra.mxu0 0.0
      %859 = vmatprep.subr.mxu0 0.0
      %860 = vmatpush1.msra.mxu0 0.0
      %861 = vmatprep.subr.mxu0 0.0
      %862 = vmatpush1.msra.mxu0 0.0
      %863 = vmatprep.subr.mxu0 0.0
      %864 = vmatpush1.msra.mxu0 0.0
      %865 = vmatprep.subr.mxu0 0.0
      %866 = vmatpush1.msra.mxu0 0.0
      %867 = vmatprep.subr.mxu0 0.0
      %868 = vmatpush1.msra.mxu0 0.0
      %869 = vmatprep.subr.mxu0 0.0
      %870 = vmatpush1.msra.mxu0 0.0
      %871 = vmatprep.subr.mxu0 0.0
      %872 = vmatpush1.msra.mxu0 0.0
      %873 = vmatprep.subr.mxu0 0.0
      %874 = vmatpush1.msra.mxu0 0.0
      %875 = vmatprep.subr.mxu0 0.0
      %876 = vmatpush1.msra.mxu0 0.0
      %877 = vmatprep.mubr.f32.mxu0 0.0
      %878 = vmatmul.mubr.f32.gmra.mrb[0].mxu0 %v811
      %v879 = vpop.f32.mrb[0].mxu0
      %v880 = vadd.f32 0.0, %v879
      %v881 = vpop.f32.mrb[0].mxu0
      %882 = vdwg.mxu0
      %vm883 = vcmask 523264
      %v885 = vsel %vm883, %v880, 0
      %887 = vmatprep.subr.mxu0 0.0
      %888 = vmatpush1.msra.mxu0 %v226
      %889 = vmatprep.subr.mxu0 0.0
      %890 = vmatpush1.msra.mxu0 %v227
      %891 = vmatprep.subr.mxu0 0.0
      %892 = vmatpush1.msra.mxu0 %v228
      %893 = vmatprep.subr.mxu0 0.0
      %894 = vmatpush1.msra.mxu0 %v229
      %895 = vmatprep.subr.mxu0 0.0
      %896 = vmatpush1.msra.mxu0 %v230
      %897 = vmatprep.subr.mxu0 0.0
      %898 = vmatpush1.msra.mxu0 %v231
      %899 = vmatprep.subr.mxu0 0.0
      %900 = vmatpush1.msra.mxu0 %v232
      %901 = vmatprep.subr.mxu0 0.0
      %902 = vmatpush1.msra.mxu0 %v233
      %903 = vmatprep.subr.mxu0 0.0
      %904 = vmatpush1.msra.mxu0 0.0
      %905 = vmatprep.subr.mxu0 0.0
      %906 = vmatpush1.msra.mxu0 0.0
      %907 = vmatprep.subr.mxu0 0.0
      %908 = vmatpush1.msra.mxu0 0.0
      %909 = vmatprep.subr.mxu0 0.0
      %910 = vmatpush1.msra.mxu0 0.0
      %911 = vmatprep.subr.mxu0 0.0
      %912 = vmatpush1.msra.mxu0 0.0
      %913 = vmatprep.subr.mxu0 0.0
      %914 = vmatpush1.msra.mxu0 0.0
      %915 = vmatprep.subr.mxu0 0.0
      %916 = vmatpush1.msra.mxu0 0.0
      %917 = vmatprep.subr.mxu0 0.0
      %918 = vmatpush1.msra.mxu0 0.0
      %919 = vmatprep.subr.mxu0 0.0
      %920 = vmatpush1.msra.mxu0 0.0
      %921 = vmatprep.subr.mxu0 0.0
      %922 = vmatpush1.msra.mxu0 0.0
      %923 = vmatprep.subr.mxu0 0.0
      %924 = vmatpush1.msra.mxu0 0.0
      %925 = vmatprep.subr.mxu0 0.0
      %926 = vmatpush1.msra.mxu0 0.0
      %927 = vmatprep.subr.mxu0 0.0
      %928 = vmatpush1.msra.mxu0 0.0
      %929 = vmatprep.subr.mxu0 0.0
      %930 = vmatpush1.msra.mxu0 0.0
      %931 = vmatprep.subr.mxu0 0.0
      %932 = vmatpush1.msra.mxu0 0.0
      %933 = vmatprep.subr.mxu0 0.0
      %934 = vmatpush1.msra.mxu0 0.0
      %935 = vmatprep.subr.mxu0 0.0
      %936 = vmatpush1.msra.mxu0 0.0
      %937 = vmatprep.subr.mxu0 0.0
      %938 = vmatpush1.msra.mxu0 0.0
      %939 = vmatprep.subr.mxu0 0.0
      %940 = vmatpush1.msra.mxu0 0.0
      %941 = vmatprep.subr.mxu0 0.0
      %942 = vmatpush1.msra.mxu0 0.0
      %943 = vmatprep.subr.mxu0 0.0
      %944 = vmatpush1.msra.mxu0 0.0
      %945 = vmatprep.subr.mxu0 0.0
      %946 = vmatpush1.msra.mxu0 0.0
      %947 = vmatprep.subr.mxu0 0.0
      %948 = vmatpush1.msra.mxu0 0.0
      %949 = vmatprep.subr.mxu0 0.0
      %950 = vmatpush1.msra.mxu0 0.0
      %951 = vmatprep.mubr.f32.mxu0 0.0
      %952 = vmatmul.mubr.f32.gmra.mrb[0].mxu0 %v885
      %v953 = vpop.f32.mrb[0].mxu0
      %v954 = vadd.f32 0.0, %v953
      %v955 = vpop.f32.mrb[0].mxu0
      %956 = vdwg.mxu0
      %957 = vst.msk [vmem:[%s223] sm:$0xff] %vm883, %v954
      %p958 = scmp.lt.s32.totalorder %s17, 1
      %s959 = scalar_select %p958, %s17, 1
      %s960 = smul.addr %s959, 8
      %s961 = scalar_lea.vmem %s5, %s960
      // Predicated region
      $region41: #{residual_downsample_forward.1} parent=39 // pred_check
        %p962 = pneg %p145
      $region42: #{residual_downsample_forward.1} parent=39 // pred_check_branch
        %964 = sbr.rel (%p962) target = $region44
      $region43: #{residual_downsample_forward.1} parent=39 // pred_region
        _
      $region44: #{residual_downsample_forward.1} parent=39 // pred_fallthru
        _
    $region40: #{residual_downsample_forward.1} parent=5 // pred_fallthru
      _
    %p965 = scmp.le.s32.totalorder 2, %s12
    // Predicated region
    $region45: #{residual_downsample_forward.1} parent=5 // pred_check
      %p966 = pneg %p965
    $region46: #{residual_downsample_forward.1} parent=5 // pred_check_branch
      %968 = sbr.rel (%p966) target = $region48
    $region47: #{residual_downsample_forward.1} parent=5 // pred_region
      %s969 = ssub.s32 %s12, 2
      // Predicated region
      $region49: #{residual_downsample_forward.1} parent=47 // pred_check
        %p970 = pneg %p151
      $region50: #{residual_downsample_forward.1} parent=47 // pred_check_branch
        %972 = sbr.rel (%p970) target = $region52
      $region51: #{residual_downsample_forward.1} parent=47 // pred_region
        %p973 = scmp.lt.s32.totalorder %s18, 1
        %s974 = scalar_select %p973, %s18, 1
        %s975 = smul.addr %s974, 8
        %s976 = scalar_lea.vmem %s5, %s975
      $region52: #{residual_downsample_forward.1} parent=47 // pred_fallthru
        _
    $region48: #{residual_downsample_forward.1} parent=5 // pred_fallthru
      _
  $region6: #{residual_downsample_forward.1} parent=0 // loop_footer
    %s16 = sadd.s32 1, %s12
  $region7: #{residual_downsample_forward.1} parent=0 // loop_footer_branch
    %11 = sbr.rel target = $region3
  $region8: #{residual_downsample_forward.1} parent=0 // loop_exit
    _

</llo_original>
